<compile_context>
chip_gen: v5e
topology: v5e:2x2
jax: 0.10.0
libtpu: 0.0.40
codegen_flags: <defaults>
</compile_context>

<pallas_src>
import jax
import jax.numpy as jnp
from jax.experimental import pallas as pl
from jax.experimental.pallas import tpu as pltpu

IN_DIM = 28 * 28          # 784
HID_DIM = 400
OUT_DIM = 28 * 28         # 784
HID_PAD = 512             # 400 -> 4 x 128 lanes
OUT_PAD = 896             # 784 -> 7 x 128 lanes
B_TILE_DEFAULT = 512      # rows per grid step (multiple of 8 sublanes)


def _round_up(n, m):
    return ((n + m - 1) // m) * m


def dae_kernel(x_ref, w1_ref, b1_ref, w2_ref, b2_ref, out_ref):
    # Encoder: Linear(784 -> 512[=400 padded]) + ReLU.  bf16 operands, f32 acc.
    x = x_ref[...].astype(jnp.bfloat16)
    h = jnp.dot(x, w1_ref[...], preferred_element_type=jnp.float32)
    h = jnp.maximum(h + b1_ref[...], 0.0)

    # Decoder: Linear(512 -> 896[=784 padded]) + Sigmoid.
    y = jnp.dot(h.astype(jnp.bfloat16), w2_ref[...],
                preferred_element_type=jnp.float32)
    y = y + b2_ref[...]
    # sigmoid(y) = 1 / (1 + exp(-y)); exp and approx reciprocal both hit the
    # EUP slot, leaving VALU/MXU slots free for the next pipelined tile.
    out_ref[...] = pl.reciprocal(1.0 + jnp.exp(-y), approx=True)


def prepare_params(w1, b1, w2, b2):
    """Pad params to lane-friendly shapes and cast weights to bf16.

    Inputs are stored transposed relative to PyTorch (y = x @ W + b):
      w1: [784, 400], b1: [400], w2: [400, 784], b2: [784]  (all f32)
    """
    w1p = jnp.zeros((IN_DIM, HID_PAD), jnp.float32).at[:, :HID_DIM].set(w1)
    b1p = jnp.zeros((1, HID_PAD), jnp.float32).at[0, :HID_DIM].set(b1)
    w2p = jnp.zeros((HID_PAD, OUT_PAD), jnp.float32).at[:HID_DIM, :OUT_DIM].set(w2)
    b2p = jnp.zeros((1, OUT_PAD), jnp.float32).at[0, :OUT_DIM].set(b2)
    return (w1p.astype(jnp.bfloat16), b1p,
            w2p.astype(jnp.bfloat16), b2p)


def denoising_autoencoder(x, params, *, b_tile=B_TILE_DEFAULT):
    """x: [B, 784] f32 -> [B, 784] f32 (sigmoid reconstruction)."""
    w1p, b1p, w2p, b2p = params
    B = x.shape[0]

    bt = min(b_tile, _round_up(B, 8))   # small batches collapse to one tile
    b_pad = _round_up(B, bt)
    if b_pad != B:
        x = jnp.pad(x, ((0, b_pad - B), (0, 0)))

    out = pl.pallas_call(
        dae_kernel,
        out_shape=jax.ShapeDtypeStruct((b_pad, OUT_PAD), jnp.float32),
        grid=(b_pad // bt,),
        in_specs=[
            pl.BlockSpec((bt, IN_DIM), lambda i: (i, 0)),        # x: batch-tiled
            pl.BlockSpec((IN_DIM, HID_PAD), lambda i: (0, 0)),   # w1: resident
            pl.BlockSpec((1, HID_PAD), lambda i: (0, 0)),        # b1: resident
            pl.BlockSpec((HID_PAD, OUT_PAD), lambda i: (0, 0)),  # w2: resident
            pl.BlockSpec((1, OUT_PAD), lambda i: (0, 0)),        # b2: resident
        ],
        out_specs=pl.BlockSpec((bt, OUT_PAD), lambda i: (i, 0)),
        compiler_params=pltpu.CompilerParams(
            dimension_semantics=("parallel",),   # megacore on v7x
        ),
    )(x, w1p, b1p, w2p, b2p)

    return out[:B, :OUT_DIM]


def init_params(key):
    """PyTorch nn.Linear default init, stored transposed (y = x @ W + b)."""
    k1, k2, k3, k4 = jax.random.split(key, 4)
    lim1 = 1.0 / jnp.sqrt(jnp.float32(IN_DIM))
    lim2 = 1.0 / jnp.sqrt(jnp.float32(HID_DIM))
    w1 = jax.random.uniform(k1, (IN_DIM, HID_DIM), jnp.float32, -lim1, lim1)
    b1 = jax.random.uniform(k2, (HID_DIM,), jnp.float32, -lim1, lim1)
    w2 = jax.random.uniform(k3, (HID_DIM, OUT_DIM), jnp.float32, -lim2, lim2)
    b2 = jax.random.uniform(k4, (OUT_DIM,), jnp.float32, -lim2, lim2)
    return w1, b1, w2, b2


if __name__ == "__main__":
    key = jax.random.PRNGKey(0)
    k_x, k_p = jax.random.split(key)

    B = 8  # small batch for the harness; the kernel tiles/pipelines any B
    x = jax.random.uniform(k_x, (B, IN_DIM), jnp.float32)  # "images" in [0, 1)

    w1, b1, w2, b2 = init_params(k_p)
    params = prepare_params(w1, b1, w2, b2)

    # TODO(synk): nn.Dropout(p=0.5) exists on the module but is not applied in
    # forward(), so it is intentionally omitted here.
    out = jax.block_until_ready(denoising_autoencoder(x, params))
    assert out.shape == (B, OUT_DIM)

    # Reference: plain-JAX f32 forward (the exact PyTorch math). bf16 weights
    # + approx reciprocal cost only ~1e-3 absolute error on [0,1] sigmoids.
    ref = jax.nn.sigmoid(jnp.maximum(x @ w1 + b1, 0.0) @ w2 + b2)
    assert jnp.allclose(out, ref, atol=2e-2, rtol=0.0), (
        float(jnp.max(jnp.abs(out - ref))))

    print("KERNEL_OK")
</pallas_src>

<mosaic_0001>
module attributes {stable_mosaic.version = 11 : i64} {
  func.func @dae_kernel(%arg0: i32, %arg1: memref<8x784xf32, #tpu.memory_space<vmem>>, %arg2: memref<784x512xbf16, #tpu.memory_space<vmem>>, %arg3: memref<1x512xf32, #tpu.memory_space<vmem>>, %arg4: memref<512x896xbf16, #tpu.memory_space<vmem>>, %arg5: memref<1x896xf32, #tpu.memory_space<vmem>>, %arg6: memref<8x896xf32, #tpu.memory_space<vmem>>) attributes {dimension_semantics = [#tpu.dimension_semantics<parallel>], iteration_bounds = array<i64: 1>, scalar_prefetch = 0 : i64, scratch_operands = 0 : i64, tpu.core_type = #tpu.core_type<tc>, window_params = [{transform_indices = @transform_0, window_bounds = array<i64: 8, 784>}, {pipeline_mode = #tpu.pipeline_mode<synchronous>, transform_indices = @transform_1, window_bounds = array<i64: 784, 512>}, {pipeline_mode = #tpu.pipeline_mode<synchronous>, transform_indices = @transform_2, window_bounds = array<i64: 1, 512>}, {pipeline_mode = #tpu.pipeline_mode<synchronous>, transform_indices = @transform_3, window_bounds = array<i64: 512, 896>}, {pipeline_mode = #tpu.pipeline_mode<synchronous>, transform_indices = @transform_4, window_bounds = array<i64: 1, 896>}, {transform_indices = @transform_5, window_bounds = array<i64: 8, 896>}]} {
    %c0 = arith.constant 0 : index
    %c0_0 = arith.constant 0 : index
    %0 = vector.load %arg1[%c0, %c0_0] : memref<8x784xf32, #tpu.memory_space<vmem>>, vector<8x784xf32>
    %1 = arith.truncf %0 : vector<8x784xf32> to vector<8x784xbf16>
    %c0_1 = arith.constant 0 : index
    %c0_2 = arith.constant 0 : index
    %2 = vector.load %arg2[%c0_1, %c0_2] : memref<784x512xbf16, #tpu.memory_space<vmem>>, vector<784x512xbf16>
    %cst = arith.constant dense<0.000000e+00> : vector<8x512xf32>
    %3 = tpu.matmul %1, %2, %cst {dimension_numbers = #tpu.dot_dimension_numbers<[1], [0], [0], [1], [0, 0, 1, 1], [], []>} : vector<8x784xbf16>, vector<784x512xbf16>, vector<8x512xf32> -> vector<8x512xf32>
    %c0_3 = arith.constant 0 : index
    %c0_4 = arith.constant 0 : index
    %4 = vector.load %arg3[%c0_3, %c0_4] : memref<1x512xf32, #tpu.memory_space<vmem>>, vector<1x512xf32>
    %5 = vector.broadcast %4 : vector<1x512xf32> to vector<8x512xf32>
    %6 = arith.addf %3, %5 : vector<8x512xf32>
    %cst_5 = arith.constant 0.000000e+00 : f32
    %7 = vector.broadcast %cst_5 : f32 to vector<8x512xf32>
    %8 = arith.maximumf %6, %7 : vector<8x512xf32>
    %9 = arith.truncf %8 : vector<8x512xf32> to vector<8x512xbf16>
    %c0_6 = arith.constant 0 : index
    %c0_7 = arith.constant 0 : index
    %10 = vector.load %arg4[%c0_6, %c0_7] : memref<512x896xbf16, #tpu.memory_space<vmem>>, vector<512x896xbf16>
    %cst_8 = arith.constant dense<0.000000e+00> : vector<8x896xf32>
    %11 = tpu.matmul %9, %10, %cst_8 {dimension_numbers = #tpu.dot_dimension_numbers<[1], [0], [0], [1], [0, 0, 1, 1], [], []>} : vector<8x512xbf16>, vector<512x896xbf16>, vector<8x896xf32> -> vector<8x896xf32>
    %c0_9 = arith.constant 0 : index
    %c0_10 = arith.constant 0 : index
    %12 = vector.load %arg5[%c0_9, %c0_10] : memref<1x896xf32, #tpu.memory_space<vmem>>, vector<1x896xf32>
    %13 = vector.broadcast %12 : vector<1x896xf32> to vector<8x896xf32>
    %14 = arith.addf %11, %13 : vector<8x896xf32>
    %cst_11 = arith.constant 0.000000e+00 : f32
    %15 = vector.broadcast %cst_11 : f32 to vector<8x896xf32>
    %16 = arith.subf %15, %14 : vector<8x896xf32>
    %17 = math.exp %16 : vector<8x896xf32>
    %cst_12 = arith.constant 1.000000e+00 : f32
    %18 = vector.broadcast %cst_12 : f32 to vector<8x896xf32>
    %19 = arith.addf %18, %17 : vector<8x896xf32>
    %20 = tpu.reciprocal %19 {approx = true} : vector<8x896xf32> -> vector<8x896xf32>
    %c0_13 = arith.constant 0 : index
    %c0_14 = arith.constant 0 : index
    %21 = vector.load %arg6[%c0_13, %c0_14] : memref<8x896xf32, #tpu.memory_space<vmem>>, vector<8x896xf32>
    tpu.vector_store %arg6[%c0_13, %c0_14], %20 {strides = array<i32>} : memref<8x896xf32, #tpu.memory_space<vmem>>, vector<8x896xf32>,
    return
  }
  func.func @transform_0(%arg0: i32) -> (i32, i32) {
    %c0_i32 = arith.constant 0 : i32
    %c0_i32_0 = arith.constant 0 : i32
    return %arg0, %c0_i32 : i32, i32
  }
  func.func @transform_1(%arg0: i32) -> (i32, i32) {
    %c0_i32 = arith.constant 0 : i32
    %c0_i32_0 = arith.constant 0 : i32
    %c0_i32_1 = arith.constant 0 : i32
    return %c0_i32, %c0_i32_0 : i32, i32
  }
  func.func @transform_2(%arg0: i32) -> (i32, i32) {
    %c0_i32 = arith.constant 0 : i32
    %c0_i32_0 = arith.constant 0 : i32
    %c0_i32_1 = arith.constant 0 : i32
    return %c0_i32, %c0_i32_0 : i32, i32
  }
  func.func @transform_3(%arg0: i32) -> (i32, i32) {
    %c0_i32 = arith.constant 0 : i32
    %c0_i32_0 = arith.constant 0 : i32
    %c0_i32_1 = arith.constant 0 : i32
    return %c0_i32, %c0_i32_0 : i32, i32
  }
  func.func @transform_4(%arg0: i32) -> (i32, i32) {
    %c0_i32 = arith.constant 0 : i32
    %c0_i32_0 = arith.constant 0 : i32
    %c0_i32_1 = arith.constant 0 : i32
    return %c0_i32, %c0_i32_0 : i32, i32
  }
  func.func @transform_5(%arg0: i32) -> (i32, i32) {
    %c0_i32 = arith.constant 0 : i32
    %c0_i32_0 = arith.constant 0 : i32
    return %arg0, %c0_i32 : i32, i32
  }
}

</mosaic_0001>

<llo_original>
// kernel: tpu_custom_call.1
$region0: #{tpu_custom_call.1}
  #allocation0 [shape = 'u32[]', space=smem, size = 0x4, offset = 0x4, fixed_abs, tag = 'smem constant byte address 0x4 - core index']
  #allocation1 [shape = 'u32[72,128]{1,0:T(1,128)}', space=vmem, size = 0x9000, scoped, tag = 'internal scratch']
  %s0 = inlined_call_operand.hbm [shape: f32[8,784], index: 0, kind: input, shape index: {}]
  %s1 = inlined_call_operand.hbm [shape: bf16[784,512], index: 1, kind: input, shape index: {}]
  %s2 = inlined_call_operand.hbm [shape: f32[1,512], index: 2, kind: input, shape index: {}]
  %s3 = inlined_call_operand.hbm [shape: bf16[512,896], index: 3, kind: input, shape index: {}]
  %s4 = inlined_call_operand.hbm [shape: f32[1,896], index: 4, kind: input, shape index: {}]
  %s5 = inlined_call_operand.hbm [shape: f32[8,896], index: 5, kind: output, shape index: {}]
  %s6 = sld [smem:[#allocation0]]
  $region50: #{tpu_custom_call.1} parent=0
    _
  %s8 = ssub.s32 1, %s6
  %s9 = scalar_select 0, %s8, %s6
  $region1: #{tpu_custom_call.1} parent=0
    #allocation2 [shape = 'u8[28672]{0}', space=vmem, size = 0x7000, scoped, tag = 'input window, operand 0, single buffered']
    #allocation3 [shape = 's32[1]{0}', space=sflag, size = 0x4, scoped, tag = 'scoped memory for tpu_custom_call.1']
    #allocation4 [shape = 's32[1]{0}', space=sflag, size = 0x4, scoped, tag = 'scoped memory for tpu_custom_call.1']
    #allocation5 [shape = 'u8[802816]{0}', space=vmem, size = 0xc4000, scoped, tag = 'input window, operand 1, single buffered']
    #allocation6 [shape = 's32[1]{0}', space=sflag, size = 0x4, scoped, tag = 'scoped memory for tpu_custom_call.1']
    #allocation7 [shape = 'u8[2048]{0}', space=vmem, size = 0x800, scoped, tag = 'input window, operand 2, single buffered']
    #allocation8 [shape = 'u8[917504]{0}', space=vmem, size = 0xe0000, scoped, tag = 'input window, operand 3, single buffered']
    #allocation9 [shape = 's32[1]{0}', space=sflag, size = 0x4, scoped, tag = 'scoped memory for tpu_custom_call.1']
    #allocation10 [shape = 'u8[3584]{0}', space=vmem, size = 0x1000, scoped, tag = 'input window, operand 4, single buffered']
    #allocation11 [shape = 'u8[28672]{0}', space=vmem, size = 0x7000, scoped, tag = 'output window, operand 0, single buffered']
    %10 = vsyncpa [#allocation3], 0
    %11 = vsyncpa [#allocation6], 0
    %12 = vsyncpa [#allocation9], 0
    %13 = vsyncpa [#allocation4], 0
    // Predicated region
    $region2: #{tpu_custom_call.1} parent=1 // pred_check
      _
    $region3: #{tpu_custom_call.1} parent=1 // pred_check_branch
      %15 = sbr.rel (0) target = $region5
    $region4: #{tpu_custom_call.1} parent=1 // pred_region
      %17 = vsyncadd [#allocation3], 0
      %s19 = sshll.u32 %s0, 4
      %s20 = int_to_ptr.hbm [resolvable:$true] %s19
      %s21 = sshll.u32 [#allocation2], 4
      %s22 = int_to_ptr.vmem [resolvable:$true] %s21
      %24 = dma.hbm_to_vmem [thread:$0]  %s20, 896, %s22, [#allocation3]
    $region5: #{tpu_custom_call.1} parent=1 // pred_fallthru
      _
    // Predicated region
    $region6: #{tpu_custom_call.1} parent=1 // pred_check
      _
    $region7: #{tpu_custom_call.1} parent=1 // pred_check_branch
      %26 = sbr.rel (0) target = $region9
    $region8: #{tpu_custom_call.1} parent=1 // pred_region
      %28 = vsyncadd [#allocation6], 0
      %s29 = sshll.u32 %s1, 4
      %s30 = int_to_ptr.hbm [resolvable:$true] %s29
      %s31 = sshll.u32 [#allocation5], 4
      %s32 = int_to_ptr.vmem [resolvable:$true] %s31
      %37 = dma.hbm_to_vmem [thread:$0]  %s30, 25088, %s32, [#allocation6], 256, 256, 16
    $region9: #{tpu_custom_call.1} parent=1 // pred_fallthru
      _
    // Predicated region
    $region10: #{tpu_custom_call.1} parent=1 // pred_check
      _
    $region11: #{tpu_custom_call.1} parent=1 // pred_check_branch
      %39 = sbr.rel (0) target = $region13
    $region12: #{tpu_custom_call.1} parent=1 // pred_region
      %41 = vsyncadd [#allocation6], 0
      %s43 = sshll.u32 %s2, 4
      %s44 = int_to_ptr.hbm [resolvable:$true] %s43
      %s45 = sshll.u32 [#allocation7], 4
      %s46 = int_to_ptr.vmem [resolvable:$true] %s45
      %48 = dma.hbm_to_vmem [thread:$0]  %s44, 64, %s46, [#allocation6]
    $region13: #{tpu_custom_call.1} parent=1 // pred_fallthru
      _
    // Predicated region
    $region14: #{tpu_custom_call.1} parent=1 // pred_check
      _
    $region15: #{tpu_custom_call.1} parent=1 // pred_check_branch
      %50 = sbr.rel (0) target = $region17
    $region16: #{tpu_custom_call.1} parent=1 // pred_region
      %52 = vsyncadd [#allocation9], 0
      %s53 = sshll.u32 %s3, 4
      %s54 = int_to_ptr.hbm [resolvable:$true] %s53
      %s55 = sshll.u32 [#allocation8], 4
      %s56 = int_to_ptr.vmem [resolvable:$true] %s55
      %61 = dma.hbm_to_vmem [thread:$0]  %s54, 28672, %s56, [#allocation9], 448, 448, 28
    $region17: #{tpu_custom_call.1} parent=1 // pred_fallthru
      _
    // Predicated region
    $region18: #{tpu_custom_call.1} parent=1 // pred_check
      _
    $region19: #{tpu_custom_call.1} parent=1 // pred_check_branch
      %63 = sbr.rel (0) target = $region21
    $region20: #{tpu_custom_call.1} parent=1 // pred_region
      %65 = vsyncadd [#allocation9], 0
      %s67 = sshll.u32 %s4, 4
      %s68 = int_to_ptr.hbm [resolvable:$true] %s67
      %s69 = sshll.u32 [#allocation10], 4
      %s70 = int_to_ptr.vmem [resolvable:$true] %s69
      %72 = dma.hbm_to_vmem [thread:$0]  %s68, 112, %s70, [#allocation9]
    $region21: #{tpu_custom_call.1} parent=1 // pred_fallthru
      _
    // Predicated region
    $region22: #{tpu_custom_call.1} parent=1 // pred_check
      _
    $region23: #{tpu_custom_call.1} parent=1 // pred_check_branch
      %74 = sbr.rel (0) target = $region25
    $region24: #{tpu_custom_call.1} parent=1 // pred_region
      %76 = dma.done [#allocation3], 896
    $region25: #{tpu_custom_call.1} parent=1 // pred_fallthru
      _
    // Predicated region
    $region26: #{tpu_custom_call.1} parent=1 // pred_check
      _
    $region27: #{tpu_custom_call.1} parent=1 // pred_check_branch
      %78 = sbr.rel (0) target = $region29
    $region28: #{tpu_custom_call.1} parent=1 // pred_region
      %80 = dma.done [#allocation6], 25088
    $region29: #{tpu_custom_call.1} parent=1 // pred_fallthru
      _
    // Predicated region
    $region30: #{tpu_custom_call.1} parent=1 // pred_check
      _
    $region31: #{tpu_custom_call.1} parent=1 // pred_check_branch
      %82 = sbr.rel (0) target = $region33
    $region32: #{tpu_custom_call.1} parent=1 // pred_region
      %84 = dma.done [#allocation6], 64
    $region33: #{tpu_custom_call.1} parent=1 // pred_fallthru
      _
    // Predicated region
    $region34: #{tpu_custom_call.1} parent=1 // pred_check
      _
    $region35: #{tpu_custom_call.1} parent=1 // pred_check_branch
      %86 = sbr.rel (0) target = $region37
    $region36: #{tpu_custom_call.1} parent=1 // pred_region
      %88 = dma.done [#allocation9], 28672
    $region37: #{tpu_custom_call.1} parent=1 // pred_fallthru
      _
    // Predicated region
    $region38: #{tpu_custom_call.1} parent=1 // pred_check
      _
    $region39: #{tpu_custom_call.1} parent=1 // pred_check_branch
      %90 = sbr.rel (0) target = $region41
    $region40: #{tpu_custom_call.1} parent=1 // pred_region
      %92 = dma.done [#allocation9], 112
    $region41: #{tpu_custom_call.1} parent=1 // pred_fallthru
      _
    %v94 = vld [vmem:[#allocation2] sm:$0xff]
    %v95 = vld [vmem:[#allocation2 + $0x8] sm:$0xff]
    %v96 = vld [vmem:[#allocation2 + $0x10] sm:$0xff]
    %v97 = vld [vmem:[#allocation2 + $0x18] sm:$0xff]
    %v98 = vld [vmem:[#allocation2 + $0x20] sm:$0xff]
    %v99 = vld [vmem:[#allocation2 + $0x28] sm:$0xff]
    %v100 = vld [vmem:[#allocation2 + $0x30] sm:$0xff]
    %v101 = vpack.c.bf16 %v94, %v94
    %v102 = vpack.c.bf16 %v95, %v95
    %v103 = vpack.c.bf16 %v96, %v96
    %v104 = vpack.c.bf16 %v97, %v97
    %v105 = vpack.c.bf16 %v98, %v98
    %v106 = vpack.c.bf16 %v99, %v99
    %v107 = vpack.c.bf16 %v100, %v100
    %v108 = vld [vmem:[#allocation5] sm:$0xff]
    %v109 = vld [vmem:[#allocation5 + $0x8] sm:$0xff]
    %v110 = vld [vmem:[#allocation5 + $0x10] sm:$0xff]
    %v111 = vld [vmem:[#allocation5 + $0x18] sm:$0xff]
    %v112 = vld [vmem:[#allocation5 + $0x20] sm:$0xff]
    %v113 = vld [vmem:[#allocation5 + $0x28] sm:$0xff]
    %v114 = vld [vmem:[#allocation5 + $0x30] sm:$0xff]
    %v115 = vld [vmem:[#allocation5 + $0x38] sm:$0xff]
    %v116 = vld [vmem:[#allocation5 + $0x40] sm:$0xff]
    %v117 = vld [vmem:[#allocation5 + $0x48] sm:$0xff]
    %v118 = vld [vmem:[#allocation5 + $0x50] sm:$0xff]
    %v119 = vld [vmem:[#allocation5 + $0x58] sm:$0xff]
    %v120 = vld [vmem:[#allocation5 + $0x60] sm:$0xff]
    %v121 = vld [vmem:[#allocation5 + $0x68] sm:$0xff]
    %v122 = vld [vmem:[#allocation5 + $0x70] sm:$0xff]
    %v123 = vld [vmem:[#allocation5 + $0x78] sm:$0xff]
    %v124 = vld [vmem:[#allocation5 + $0x80] sm:$0xff]
    %v125 = vld [vmem:[#allocation5 + $0x88] sm:$0xff]
    %v126 = vld [vmem:[#allocation5 + $0x90] sm:$0xff]
    %v127 = vld [vmem:[#allocation5 + $0x98] sm:$0xff]
    %v128 = vld [vmem:[#allocation5 + $0xa0] sm:$0xff]
    %v129 = vld [vmem:[#allocation5 + $0xa8] sm:$0xff]
    %v130 = vld [vmem:[#allocation5 + $0xb0] sm:$0xff]
    %v131 = vld [vmem:[#allocation5 + $0xb8] sm:$0xff]
    %v132 = vld [vmem:[#allocation5 + $0xc0] sm:$0xff]
    %v133 = vld [vmem:[#allocation5 + $0xc8] sm:$0xff]
    %v134 = vld [vmem:[#allocation5 + $0xd0] sm:$0xff]
    %v135 = vld [vmem:[#allocation5 + $0xd8] sm:$0xff]
    %v136 = vld [vmem:[#allocation5 + $0xe0] sm:$0xff]
    %v137 = vld [vmem:[#allocation5 + $0xe8] sm:$0xff]
    %v138 = vld [vmem:[#allocation5 + $0xf0] sm:$0xff]
    %v139 = vld [vmem:[#allocation5 + $0xf8] sm:$0xff]
    %v140 = vld [vmem:[#allocation5 + $0x100] sm:$0xff]
    %v141 = vld [vmem:[#allocation5 + $0x108] sm:$0xff]
    %v142 = vld [vmem:[#allocation5 + $0x110] sm:$0xff]
    %v143 = vld [vmem:[#allocation5 + $0x118] sm:$0xff]
    %v144 = vld [vmem:[#allocation5 + $0x120] sm:$0xff]
    %v145 = vld [vmem:[#allocation5 + $0x128] sm:$0xff]
    %v146 = vld [vmem:[#allocation5 + $0x130] sm:$0xff]
    %v147 = vld [vmem:[#allocation5 + $0x138] sm:$0xff]
    %v148 = vld [vmem:[#allocation5 + $0x140] sm:$0xff]
    %v149 = vld [vmem:[#allocation5 + $0x148] sm:$0xff]
    %v150 = vld [vmem:[#allocation5 + $0x150] sm:$0xff]
    %v151 = vld [vmem:[#allocation5 + $0x158] sm:$0xff]
    %v152 = vld [vmem:[#allocation5 + $0x160] sm:$0xff]
    %v153 = vld [vmem:[#allocation5 + $0x168] sm:$0xff]
    %v154 = vld [vmem:[#allocation5 + $0x170] sm:$0xff]
    %v155 = vld [vmem:[#allocation5 + $0x178] sm:$0xff]
    %v156 = vld [vmem:[#allocation5 + $0x180] sm:$0xff]
    %v157 = vld [vmem:[#allocation5 + $0x188] sm:$0xff]
    %v158 = vld [vmem:[#allocation5 + $0x190] sm:$0xff]
    %v159 = vld [vmem:[#allocation5 + $0x198] sm:$0xff]
    %v160 = vld [vmem:[#allocation5 + $0x1a0] sm:$0xff]
    %v161 = vld [vmem:[#allocation5 + $0x1a8] sm:$0xff]
    %v162 = vld [vmem:[#allocation5 + $0x1b0] sm:$0xff]
    %v163 = vld [vmem:[#allocation5 + $0x1b8] sm:$0xff]
    %v164 = vld [vmem:[#allocation5 + $0x1c0] sm:$0xff]
    %v165 = vld [vmem:[#allocation5 + $0x1c8] sm:$0xff]
    %v166 = vld [vmem:[#allocation5 + $0x1d0] sm:$0xff]
    %v167 = vld [vmem:[#allocation5 + $0x1d8] sm:$0xff]
    %v168 = vld [vmem:[#allocation5 + $0x1e0] sm:$0xff]
    %v169 = vld [vmem:[#allocation5 + $0x1e8] sm:$0xff]
    %v170 = vld [vmem:[#allocation5 + $0x1f0] sm:$0xff]
    %v171 = vld [vmem:[#allocation5 + $0x1f8] sm:$0xff]
    %v172 = vld [vmem:[#allocation5 + $0x200] sm:$0xff]
    %v173 = vld [vmem:[#allocation5 + $0x208] sm:$0xff]
    %v174 = vld [vmem:[#allocation5 + $0x210] sm:$0xff]
    %v175 = vld [vmem:[#allocation5 + $0x218] sm:$0xff]
    %v176 = vld [vmem:[#allocation5 + $0x220] sm:$0xff]
    %v177 = vld [vmem:[#allocation5 + $0x228] sm:$0xff]
    %v178 = vld [vmem:[#allocation5 + $0x230] sm:$0xff]
    %v179 = vld [vmem:[#allocation5 + $0x238] sm:$0xff]
    %v180 = vld [vmem:[#allocation5 + $0x240] sm:$0xff]
    %v181 = vld [vmem:[#allocation5 + $0x248] sm:$0xff]
    %v182 = vld [vmem:[#allocation5 + $0x250] sm:$0xff]
    %v183 = vld [vmem:[#allocation5 + $0x258] sm:$0xff]
    %v184 = vld [vmem:[#allocation5 + $0x260] sm:$0xff]
    %v185 = vld [vmem:[#allocation5 + $0x268] sm:$0xff]
    %v186 = vld [vmem:[#allocation5 + $0x270] sm:$0xff]
    %v187 = vld [vmem:[#allocation5 + $0x278] sm:$0xff]
    %v188 = vld [vmem:[#allocation5 + $0x280] sm:$0xff]
    %v189 = vld [vmem:[#allocation5 + $0x288] sm:$0xff]
    %v190 = vld [vmem:[#allocation5 + $0x290] sm:$0xff]
    %v191 = vld [vmem:[#allocation5 + $0x298] sm:$0xff]
    %v192 = vld [vmem:[#allocation5 + $0x2a0] sm:$0xff]
    %v193 = vld [vmem:[#allocation5 + $0x2a8] sm:$0xff]
    %v194 = vld [vmem:[#allocation5 + $0x2b0] sm:$0xff]
    %v195 = vld [vmem:[#allocation5 + $0x2b8] sm:$0xff]
    %v196 = vld [vmem:[#allocation5 + $0x2c0] sm:$0xff]
    %v197 = vld [vmem:[#allocation5 + $0x2c8] sm:$0xff]
    %v198 = vld [vmem:[#allocation5 + $0x2d0] sm:$0xff]
    %v199 = vld [vmem:[#allocation5 + $0x2d8] sm:$0xff]
    %v200 = vld [vmem:[#allocation5 + $0x2e0] sm:$0xff]
    %v201 = vld [vmem:[#allocation5 + $0x2e8] sm:$0xff]
    %v202 = vld [vmem:[#allocation5 + $0x2f0] sm:$0xff]
    %v203 = vld [vmem:[#allocation5 + $0x2f8] sm:$0xff]
    %v204 = vld [vmem:[#allocation5 + $0x300] sm:$0xff]
    %v205 = vld [vmem:[#allocation5 + $0x308] sm:$0xff]
    %v206 = vld [vmem:[#allocation5 + $0x310] sm:$0xff]
    %v207 = vld [vmem:[#allocation5 + $0x318] sm:$0xff]
    %v208 = vld [vmem:[#allocation5 + $0x320] sm:$0xff]
    %v209 = vld [vmem:[#allocation5 + $0x328] sm:$0xff]
    %v210 = vld [vmem:[#allocation5 + $0x330] sm:$0xff]
    %v211 = vld [vmem:[#allocation5 + $0x338] sm:$0xff]
    %v212 = vld [vmem:[#allocation5 + $0x340] sm:$0xff]
    %v213 = vld [vmem:[#allocation5 + $0x348] sm:$0xff]
    %v214 = vld [vmem:[#allocation5 + $0x350] sm:$0xff]
    %v215 = vld [vmem:[#allocation5 + $0x358] sm:$0xff]
    %v216 = vld [vmem:[#allocation5 + $0x360] sm:$0xff]
    %v217 = vld [vmem:[#allocation5 + $0x368] sm:$0xff]
    %v218 = vld [vmem:[#allocation5 + $0x370] sm:$0xff]
    %v219 = vld [vmem:[#allocation5 + $0x378] sm:$0xff]
    %v220 = vld [vmem:[#allocation5 + $0x380] sm:$0xff]
    %v221 = vld [vmem:[#allocation5 + $0x388] sm:$0xff]
    %v222 = vld [vmem:[#allocation5 + $0x390] sm:$0xff]
    %v223 = vld [vmem:[#allocation5 + $0x398] sm:$0xff]
    %v224 = vld [vmem:[#allocation5 + $0x3a0] sm:$0xff]
    %v225 = vld [vmem:[#allocation5 + $0x3a8] sm:$0xff]
    %v226 = vld [vmem:[#allocation5 + $0x3b0] sm:$0xff]
    %v227 = vld [vmem:[#allocation5 + $0x3b8] sm:$0xff]
    %v228 = vld [vmem:[#allocation5 + $0x3c0] sm:$0xff]
    %v229 = vld [vmem:[#allocation5 + $0x3c8] sm:$0xff]
    %v230 = vld [vmem:[#allocation5 + $0x3d0] sm:$0xff]
    %v231 = vld [vmem:[#allocation5 + $0x3d8] sm:$0xff]
    %v232 = vld [vmem:[#allocation5 + $0x3e0] sm:$0xff]
    %v233 = vld [vmem:[#allocation5 + $0x3e8] sm:$0xff]
    %v234 = vld [vmem:[#allocation5 + $0x3f0] sm:$0xff]
    %v235 = vld [vmem:[#allocation5 + $0x3f8] sm:$0xff]
    %v236 = vld [vmem:[#allocation5 + $0x400] sm:$0xff]
    %v237 = vld [vmem:[#allocation5 + $0x408] sm:$0xff]
    %v238 = vld [vmem:[#allocation5 + $0x410] sm:$0xff]
    %v239 = vld [vmem:[#allocation5 + $0x418] sm:$0xff]
    %v240 = vld [vmem:[#allocation5 + $0x420] sm:$0xff]
    %v241 = vld [vmem:[#allocation5 + $0x428] sm:$0xff]
    %v242 = vld [vmem:[#allocation5 + $0x430] sm:$0xff]
    %v243 = vld [vmem:[#allocation5 + $0x438] sm:$0xff]
    %v244 = vld [vmem:[#allocation5 + $0x440] sm:$0xff]
    %v245 = vld [vmem:[#allocation5 + $0x448] sm:$0xff]
    %v246 = vld [vmem:[#allocation5 + $0x450] sm:$0xff]
    %v247 = vld [vmem:[#allocation5 + $0x458] sm:$0xff]
    %v248 = vld [vmem:[#allocation5 + $0x460] sm:$0xff]
    %v249 = vld [vmem:[#allocation5 + $0x468] sm:$0xff]
    %v250 = vld [vmem:[#allocation5 + $0x470] sm:$0xff]
    %v251 = vld [vmem:[#allocation5 + $0x478] sm:$0xff]
    %v252 = vld [vmem:[#allocation5 + $0x480] sm:$0xff]
    %v253 = vld [vmem:[#allocation5 + $0x488] sm:$0xff]
    %v254 = vld [vmem:[#allocation5 + $0x490] sm:$0xff]
    %v255 = vld [vmem:[#allocation5 + $0x498] sm:$0xff]
    %v256 = vld [vmem:[#allocation5 + $0x4a0] sm:$0xff]
    %v257 = vld [vmem:[#allocation5 + $0x4a8] sm:$0xff]
    %v258 = vld [vmem:[#allocation5 + $0x4b0] sm:$0xff]
    %v259 = vld [vmem:[#allocation5 + $0x4b8] sm:$0xff]
    %v260 = vld [vmem:[#allocation5 + $0x4c0] sm:$0xff]
    %v261 = vld [vmem:[#allocation5 + $0x4c8] sm:$0xff]
    %v262 = vld [vmem:[#allocation5 + $0x4d0] sm:$0xff]
    %v263 = vld [vmem:[#allocation5 + $0x4d8] sm:$0xff]
    %v264 = vld [vmem:[#allocation5 + $0x4e0] sm:$0xff]
    %v265 = vld [vmem:[#allocation5 + $0x4e8] sm:$0xff]
    %v266 = vld [vmem:[#allocation5 + $0x4f0] sm:$0xff]
    %v267 = vld [vmem:[#allocation5 + $0x4f8] sm:$0xff]
    %v268 = vld [vmem:[#allocation5 + $0x500] sm:$0xff]
    %v269 = vld [vmem:[#allocation5 + $0x508] sm:$0xff]
    %v270 = vld [vmem:[#allocation5 + $0x510] sm:$0xff]
    %v271 = vld [vmem:[#allocation5 + $0x518] sm:$0xff]
    %v272 = vld [vmem:[#allocation5 + $0x520] sm:$0xff]
    %v273 = vld [vmem:[#allocation5 + $0x528] sm:$0xff]
    %v274 = vld [vmem:[#allocation5 + $0x530] sm:$0xff]
    %v275 = vld [vmem:[#allocation5 + $0x538] sm:$0xff]
    %v276 = vld [vmem:[#allocation5 + $0x540] sm:$0xff]
    %v277 = vld [vmem:[#allocation5 + $0x548] sm:$0xff]
    %v278 = vld [vmem:[#allocation5 + $0x550] sm:$0xff]
    %v279 = vld [vmem:[#allocation5 + $0x558] sm:$0xff]
    %v280 = vld [vmem:[#allocation5 + $0x560] sm:$0xff]
    %v281 = vld [vmem:[#allocation5 + $0x568] sm:$0xff]
    %v282 = vld [vmem:[#allocation5 + $0x570] sm:$0xff]
    %v283 = vld [vmem:[#allocation5 + $0x578] sm:$0xff]
    %v284 = vld [vmem:[#allocation5 + $0x580] sm:$0xff]
    %v285 = vld [vmem:[#allocation5 + $0x588] sm:$0xff]
    %v286 = vld [vmem:[#allocation5 + $0x590] sm:$0xff]
    %v287 = vld [vmem:[#allocation5 + $0x598] sm:$0xff]
    %v288 = vld [vmem:[#allocation5 + $0x5a0] sm:$0xff]
    %v289 = vld [vmem:[#allocation5 + $0x5a8] sm:$0xff]
    %v290 = vld [vmem:[#allocation5 + $0x5b0] sm:$0xff]
    %v291 = vld [vmem:[#allocation5 + $0x5b8] sm:$0xff]
    %v292 = vld [vmem:[#allocation5 + $0x5c0] sm:$0xff]
    %v293 = vld [vmem:[#allocation5 + $0x5c8] sm:$0xff]
    %v294 = vld [vmem:[#allocation5 + $0x5d0] sm:$0xff]
    %v295 = vld [vmem:[#allocation5 + $0x5d8] sm:$0xff]
    %v296 = vld [vmem:[#allocation5 + $0x5e0] sm:$0xff]
    %v297 = vld [vmem:[#allocation5 + $0x5e8] sm:$0xff]
    %v298 = vld [vmem:[#allocation5 + $0x5f0] sm:$0xff]
    %v299 = vld [vmem:[#allocation5 + $0x5f8] sm:$0xff]
    %v300 = vld [vmem:[#allocation5 + $0x600] sm:$0xff]
    %v301 = vld [vmem:[#allocation5 + $0x608] sm:$0xff]
    %v302 = vld [vmem:[#allocation5 + $0x610] sm:$0xff]
    %v303 = vld [vmem:[#allocation5 + $0x618] sm:$0xff]
    %v304 = vld [vmem:[#allocation7] sm:$0xf]
    %v306 = vperm.slane %v304, 0
    %v307 = vperm.slane %v304, 1
    %v308 = vperm.slane %v304, 2
    %v309 = vperm.slane %v304, 3
    %v510 = vunpack.c.l.b16 %v108
    %v511 = vunpack.c.h.b16 %v108
    %v512 = vunpack.c.l.b16 %v109
    %v513 = vunpack.c.h.b16 %v109
    %v514 = vunpack.c.l.b16 %v110
    %v515 = vunpack.c.h.b16 %v110
    %v516 = vunpack.c.l.b16 %v111
    %v517 = vunpack.c.h.b16 %v111
    %v518 = vunpack.c.l.b16 %v112
    %v519 = vunpack.c.h.b16 %v112
    %v520 = vunpack.c.l.b16 %v113
    %v521 = vunpack.c.h.b16 %v113
    %v522 = vunpack.c.l.b16 %v114
    %v523 = vunpack.c.h.b16 %v114
    %v524 = vunpack.c.l.b16 %v115
    %v525 = vunpack.c.h.b16 %v115
    %v526 = vunpack.c.l.b16 %v116
    %v527 = vunpack.c.h.b16 %v116
    %v528 = vunpack.c.l.b16 %v117
    %v529 = vunpack.c.h.b16 %v117
    %v530 = vunpack.c.l.b16 %v118
    %v531 = vunpack.c.h.b16 %v118
    %v532 = vunpack.c.l.b16 %v119
    %v533 = vunpack.c.h.b16 %v119
    %v534 = vunpack.c.l.b16 %v120
    %v535 = vunpack.c.h.b16 %v120
    %v536 = vunpack.c.l.b16 %v121
    %v537 = vunpack.c.h.b16 %v121
    %v538 = vunpack.c.l.b16 %v122
    %v539 = vunpack.c.h.b16 %v122
    %v540 = vunpack.c.l.b16 %v123
    %v541 = vunpack.c.h.b16 %v123
    %v542 = vunpack.c.l.b16 %v124
    %v543 = vunpack.c.h.b16 %v124
    %v544 = vunpack.c.l.b16 %v125
    %v545 = vunpack.c.h.b16 %v125
    %v546 = vunpack.c.l.b16 %v126
    %v547 = vunpack.c.h.b16 %v126
    %v548 = vunpack.c.l.b16 %v127
    %v549 = vunpack.c.h.b16 %v127
    %v550 = vunpack.c.l.b16 %v128
    %v551 = vunpack.c.h.b16 %v128
    %v552 = vunpack.c.l.b16 %v129
    %v553 = vunpack.c.h.b16 %v129
    %v554 = vunpack.c.l.b16 %v130
    %v555 = vunpack.c.h.b16 %v130
    %v556 = vunpack.c.l.b16 %v131
    %v557 = vunpack.c.h.b16 %v131
    %v558 = vunpack.c.l.b16 %v132
    %v559 = vunpack.c.h.b16 %v132
    %v560 = vunpack.c.l.b16 %v133
    %v561 = vunpack.c.h.b16 %v133
    %v562 = vunpack.c.l.b16 %v134
    %v563 = vunpack.c.h.b16 %v134
    %v564 = vunpack.c.l.b16 %v135
    %v565 = vunpack.c.h.b16 %v135
    %v566 = vunpack.c.l.b16 %v136
    %v567 = vunpack.c.h.b16 %v136
    %v568 = vunpack.c.l.b16 %v137
    %v569 = vunpack.c.h.b16 %v137
    %v570 = vunpack.c.l.b16 %v138
    %v571 = vunpack.c.h.b16 %v138
    %v572 = vunpack.c.l.b16 %v139
    %v573 = vunpack.c.h.b16 %v139
    %v574 = vunpack.c.l.b16 %v140
    %v575 = vunpack.c.h.b16 %v140
    %v576 = vunpack.c.l.b16 %v141
    %v577 = vunpack.c.h.b16 %v141
    %v578 = vunpack.c.l.b16 %v142
    %v579 = vunpack.c.h.b16 %v142
    %v580 = vunpack.c.l.b16 %v143
    %v581 = vunpack.c.h.b16 %v143
    %v582 = vunpack.c.l.b16 %v144
    %v583 = vunpack.c.h.b16 %v144
    %v584 = vunpack.c.l.b16 %v145
    %v585 = vunpack.c.h.b16 %v145
    %v586 = vunpack.c.l.b16 %v146
    %v587 = vunpack.c.h.b16 %v146
    %v588 = vunpack.c.l.b16 %v147
    %v589 = vunpack.c.h.b16 %v147
    %v590 = vunpack.c.l.b16 %v148
    %v591 = vunpack.c.h.b16 %v148
    %v592 = vunpack.c.l.b16 %v149
    %v593 = vunpack.c.h.b16 %v149
    %v594 = vunpack.c.l.b16 %v150
    %v595 = vunpack.c.h.b16 %v150
    %v596 = vunpack.c.l.b16 %v151
    %v597 = vunpack.c.h.b16 %v151
    %v598 = vunpack.c.l.b16 %v152
    %v599 = vunpack.c.h.b16 %v152
    %v600 = vunpack.c.l.b16 %v153
    %v601 = vunpack.c.h.b16 %v153
    %v602 = vunpack.c.l.b16 %v154
    %v603 = vunpack.c.h.b16 %v154
    %v604 = vunpack.c.l.b16 %v155
    %v605 = vunpack.c.h.b16 %v155
    %v606 = vunpack.c.l.b16 %v156
    %v607 = vunpack.c.h.b16 %v156
    %v608 = vunpack.c.l.b16 %v157
    %v609 = vunpack.c.h.b16 %v157
    %v610 = vunpack.c.l.b16 %v158
    %v611 = vunpack.c.h.b16 %v158
    %v612 = vunpack.c.l.b16 %v159
    %v613 = vunpack.c.h.b16 %v159
    %v614 = vunpack.c.l.b16 %v160
    %v615 = vunpack.c.h.b16 %v160
    %v616 = vunpack.c.l.b16 %v161
    %v617 = vunpack.c.h.b16 %v161
    %v618 = vunpack.c.l.b16 %v162
    %v619 = vunpack.c.h.b16 %v162
    %v620 = vunpack.c.l.b16 %v163
    %v621 = vunpack.c.h.b16 %v163
    %v622 = vunpack.c.l.b16 %v164
    %v623 = vunpack.c.h.b16 %v164
    %v624 = vunpack.c.l.b16 %v165
    %v625 = vunpack.c.h.b16 %v165
    %v626 = vunpack.c.l.b16 %v166
    %v627 = vunpack.c.h.b16 %v166
    %v628 = vunpack.c.l.b16 %v167
    %v629 = vunpack.c.h.b16 %v167
    %v630 = vunpack.c.l.b16 %v168
    %v631 = vunpack.c.h.b16 %v168
    %v632 = vunpack.c.l.b16 %v169
    %v633 = vunpack.c.h.b16 %v169
    %v634 = vunpack.c.l.b16 %v170
    %v635 = vunpack.c.h.b16 %v170
    %v636 = vunpack.c.l.b16 %v171
    %v637 = vunpack.c.h.b16 %v171
    %v638 = vunpack.c.l.b16 %v172
    %v639 = vunpack.c.h.b16 %v172
    %v640 = vunpack.c.l.b16 %v173
    %v641 = vunpack.c.h.b16 %v173
    %v642 = vunpack.c.l.b16 %v174
    %v643 = vunpack.c.h.b16 %v174
    %v644 = vunpack.c.l.b16 %v175
    %v645 = vunpack.c.h.b16 %v175
    %v646 = vunpack.c.l.b16 %v176
    %v647 = vunpack.c.h.b16 %v176
    %v648 = vunpack.c.l.b16 %v177
    %v649 = vunpack.c.h.b16 %v177
    %v650 = vunpack.c.l.b16 %v178
    %v651 = vunpack.c.h.b16 %v178
    %v652 = vunpack.c.l.b16 %v179
    %v653 = vunpack.c.h.b16 %v179
    %v654 = vunpack.c.l.b16 %v180
    %v655 = vunpack.c.h.b16 %v180
    %v656 = vunpack.c.l.b16 %v181
    %v657 = vunpack.c.h.b16 %v181
    %v658 = vunpack.c.l.b16 %v182
    %v659 = vunpack.c.h.b16 %v182
    %v660 = vunpack.c.l.b16 %v183
    %v661 = vunpack.c.h.b16 %v183
    %v662 = vunpack.c.l.b16 %v184
    %v663 = vunpack.c.h.b16 %v184
    %v664 = vunpack.c.l.b16 %v185
    %v665 = vunpack.c.h.b16 %v185
    %v666 = vunpack.c.l.b16 %v186
    %v667 = vunpack.c.h.b16 %v186
    %v668 = vunpack.c.l.b16 %v187
    %v669 = vunpack.c.h.b16 %v187
    %v670 = vunpack.c.l.b16 %v188
    %v671 = vunpack.c.h.b16 %v188
    %v672 = vunpack.c.l.b16 %v189
    %v673 = vunpack.c.h.b16 %v189
    %v674 = vunpack.c.l.b16 %v190
    %v675 = vunpack.c.h.b16 %v190
    %v676 = vunpack.c.l.b16 %v191
    %v677 = vunpack.c.h.b16 %v191
    %v678 = vunpack.c.l.b16 %v192
    %v679 = vunpack.c.h.b16 %v192
    %v680 = vunpack.c.l.b16 %v193
    %v681 = vunpack.c.h.b16 %v193
    %v682 = vunpack.c.l.b16 %v194
    %v683 = vunpack.c.h.b16 %v194
    %v684 = vunpack.c.l.b16 %v195
    %v685 = vunpack.c.h.b16 %v195
    %v686 = vunpack.c.l.b16 %v196
    %v687 = vunpack.c.h.b16 %v196
    %v688 = vunpack.c.l.b16 %v197
    %v689 = vunpack.c.h.b16 %v197
    %v690 = vunpack.c.l.b16 %v198
    %v691 = vunpack.c.h.b16 %v198
    %v692 = vunpack.c.l.b16 %v199
    %v693 = vunpack.c.h.b16 %v199
    %v694 = vunpack.c.l.b16 %v200
    %v695 = vunpack.c.h.b16 %v200
    %v696 = vunpack.c.l.b16 %v201
    %v697 = vunpack.c.h.b16 %v201
    %v698 = vunpack.c.l.b16 %v202
    %v699 = vunpack.c.h.b16 %v202
    %v700 = vunpack.c.l.b16 %v203
    %v701 = vunpack.c.h.b16 %v203
    %v702 = vunpack.c.l.b16 %v204
    %v703 = vunpack.c.h.b16 %v204
    %v704 = vunpack.c.l.b16 %v205
    %v705 = vunpack.c.h.b16 %v205
    %v706 = vunpack.c.l.b16 %v206
    %v707 = vunpack.c.h.b16 %v206
    %v708 = vunpack.c.l.b16 %v207
    %v709 = vunpack.c.h.b16 %v207
    %v710 = vunpack.c.l.b16 %v208
    %v711 = vunpack.c.h.b16 %v208
    %v712 = vunpack.c.l.b16 %v209
    %v713 = vunpack.c.h.b16 %v209
    %v714 = vunpack.c.l.b16 %v210
    %v715 = vunpack.c.h.b16 %v210
    %v716 = vunpack.c.l.b16 %v211
    %v717 = vunpack.c.h.b16 %v211
    %v718 = vunpack.c.l.b16 %v212
    %v719 = vunpack.c.h.b16 %v212
    %v720 = vunpack.c.l.b16 %v213
    %v721 = vunpack.c.h.b16 %v213
    %v722 = vunpack.c.l.b16 %v214
    %v723 = vunpack.c.h.b16 %v214
    %v724 = vunpack.c.l.b16 %v215
    %v725 = vunpack.c.h.b16 %v215
    %v726 = vunpack.c.l.b16 %v216
    %v727 = vunpack.c.h.b16 %v216
    %v728 = vunpack.c.l.b16 %v217
    %v729 = vunpack.c.h.b16 %v217
    %v730 = vunpack.c.l.b16 %v218
    %v731 = vunpack.c.h.b16 %v218
    %v732 = vunpack.c.l.b16 %v219
    %v733 = vunpack.c.h.b16 %v219
    %v734 = vunpack.c.l.b16 %v220
    %v735 = vunpack.c.h.b16 %v220
    %v736 = vunpack.c.l.b16 %v221
    %v737 = vunpack.c.h.b16 %v221
    %v738 = vunpack.c.l.b16 %v222
    %v739 = vunpack.c.h.b16 %v222
    %v740 = vunpack.c.l.b16 %v223
    %v741 = vunpack.c.h.b16 %v223
    %v742 = vunpack.c.l.b16 %v224
    %v743 = vunpack.c.h.b16 %v224
    %v744 = vunpack.c.l.b16 %v225
    %v745 = vunpack.c.h.b16 %v225
    %v746 = vunpack.c.l.b16 %v226
    %v747 = vunpack.c.h.b16 %v226
    %v748 = vunpack.c.l.b16 %v227
    %v749 = vunpack.c.h.b16 %v227
    %v750 = vunpack.c.l.b16 %v228
    %v751 = vunpack.c.h.b16 %v228
    %v752 = vunpack.c.l.b16 %v229
    %v753 = vunpack.c.h.b16 %v229
    %v754 = vunpack.c.l.b16 %v230
    %v755 = vunpack.c.h.b16 %v230
    %v756 = vunpack.c.l.b16 %v231
    %v757 = vunpack.c.h.b16 %v231
    %v758 = vunpack.c.l.b16 %v232
    %v759 = vunpack.c.h.b16 %v232
    %v760 = vunpack.c.l.b16 %v233
    %v761 = vunpack.c.h.b16 %v233
    %v762 = vunpack.c.l.b16 %v234
    %v763 = vunpack.c.h.b16 %v234
    %v764 = vunpack.c.l.b16 %v235
    %v765 = vunpack.c.h.b16 %v235
    %v766 = vunpack.c.l.b16 %v236
    %v767 = vunpack.c.h.b16 %v236
    %v768 = vunpack.c.l.b16 %v237
    %v769 = vunpack.c.h.b16 %v237
    %v770 = vunpack.c.l.b16 %v238
    %v771 = vunpack.c.h.b16 %v238
    %v772 = vunpack.c.l.b16 %v239
    %v773 = vunpack.c.h.b16 %v239
    %v774 = vunpack.c.l.b16 %v240
    %v775 = vunpack.c.h.b16 %v240
    %v776 = vunpack.c.l.b16 %v241
    %v777 = vunpack.c.h.b16 %v241
    %v778 = vunpack.c.l.b16 %v242
    %v779 = vunpack.c.h.b16 %v242
    %v780 = vunpack.c.l.b16 %v243
    %v781 = vunpack.c.h.b16 %v243
    %v782 = vunpack.c.l.b16 %v244
    %v783 = vunpack.c.h.b16 %v244
    %v784 = vunpack.c.l.b16 %v245
    %v785 = vunpack.c.h.b16 %v245
    %v786 = vunpack.c.l.b16 %v246
    %v787 = vunpack.c.h.b16 %v246
    %v788 = vunpack.c.l.b16 %v247
    %v789 = vunpack.c.h.b16 %v247
    %v790 = vunpack.c.l.b16 %v248
    %v791 = vunpack.c.h.b16 %v248
    %v792 = vunpack.c.l.b16 %v249
    %v793 = vunpack.c.h.b16 %v249
    %v794 = vunpack.c.l.b16 %v250
    %v795 = vunpack.c.h.b16 %v250
    %v796 = vunpack.c.l.b16 %v251
    %v797 = vunpack.c.h.b16 %v251
    %v798 = vunpack.c.l.b16 %v252
    %v799 = vunpack.c.h.b16 %v252
    %v800 = vunpack.c.l.b16 %v253
    %v801 = vunpack.c.h.b16 %v253
    %v802 = vunpack.c.l.b16 %v254
    %v803 = vunpack.c.h.b16 %v254
    %v804 = vunpack.c.l.b16 %v255
    %v805 = vunpack.c.h.b16 %v255
    %v806 = vunpack.c.l.b16 %v256
    %v807 = vunpack.c.h.b16 %v256
    %v808 = vunpack.c.l.b16 %v257
    %v809 = vunpack.c.h.b16 %v257
    %v810 = vunpack.c.l.b16 %v258
    %v811 = vunpack.c.h.b16 %v258
    %v812 = vunpack.c.l.b16 %v259
    %v813 = vunpack.c.h.b16 %v259
    %v814 = vunpack.c.l.b16 %v260
    %v815 = vunpack.c.h.b16 %v260
    %v816 = vunpack.c.l.b16 %v261
    %v817 = vunpack.c.h.b16 %v261
    %v818 = vunpack.c.l.b16 %v262
    %v819 = vunpack.c.h.b16 %v262
    %v820 = vunpack.c.l.b16 %v263
    %v821 = vunpack.c.h.b16 %v263
    %v822 = vunpack.c.l.b16 %v264
    %v823 = vunpack.c.h.b16 %v264
    %v824 = vunpack.c.l.b16 %v265
    %v825 = vunpack.c.h.b16 %v265
    %v826 = vunpack.c.l.b16 %v266
    %v827 = vunpack.c.h.b16 %v266
    %v828 = vunpack.c.l.b16 %v267
    %v829 = vunpack.c.h.b16 %v267
    %v830 = vunpack.c.l.b16 %v268
    %v831 = vunpack.c.h.b16 %v268
    %v832 = vunpack.c.l.b16 %v269
    %v833 = vunpack.c.h.b16 %v269
    %v834 = vunpack.c.l.b16 %v270
    %v835 = vunpack.c.h.b16 %v270
    %v836 = vunpack.c.l.b16 %v271
    %v837 = vunpack.c.h.b16 %v271
    %v838 = vunpack.c.l.b16 %v272
    %v839 = vunpack.c.h.b16 %v272
    %v840 = vunpack.c.l.b16 %v273
    %v841 = vunpack.c.h.b16 %v273
    %v842 = vunpack.c.l.b16 %v274
    %v843 = vunpack.c.h.b16 %v274
    %v844 = vunpack.c.l.b16 %v275
    %v845 = vunpack.c.h.b16 %v275
    %v846 = vunpack.c.l.b16 %v276
    %v847 = vunpack.c.h.b16 %v276
    %v848 = vunpack.c.l.b16 %v277
    %v849 = vunpack.c.h.b16 %v277
    %v850 = vunpack.c.l.b16 %v278
    %v851 = vunpack.c.h.b16 %v278
    %v852 = vunpack.c.l.b16 %v279
    %v853 = vunpack.c.h.b16 %v279
    %v854 = vunpack.c.l.b16 %v280
    %v855 = vunpack.c.h.b16 %v280
    %v856 = vunpack.c.l.b16 %v281
    %v857 = vunpack.c.h.b16 %v281
    %v858 = vunpack.c.l.b16 %v282
    %v859 = vunpack.c.h.b16 %v282
    %v860 = vunpack.c.l.b16 %v283
    %v861 = vunpack.c.h.b16 %v283
    %v862 = vunpack.c.l.b16 %v284
    %v863 = vunpack.c.h.b16 %v284
    %v864 = vunpack.c.l.b16 %v285
    %v865 = vunpack.c.h.b16 %v285
    %v866 = vunpack.c.l.b16 %v286
    %v867 = vunpack.c.h.b16 %v286
    %v868 = vunpack.c.l.b16 %v287
    %v869 = vunpack.c.h.b16 %v287
    %v870 = vunpack.c.l.b16 %v288
    %v871 = vunpack.c.h.b16 %v288
    %v872 = vunpack.c.l.b16 %v289
    %v873 = vunpack.c.h.b16 %v289
    %v874 = vunpack.c.l.b16 %v290
    %v875 = vunpack.c.h.b16 %v290
    %v876 = vunpack.c.l.b16 %v291
    %v877 = vunpack.c.h.b16 %v291
    %v878 = vunpack.c.l.b16 %v292
    %v879 = vunpack.c.h.b16 %v292
    %v880 = vunpack.c.l.b16 %v293
    %v881 = vunpack.c.h.b16 %v293
    %v882 = vunpack.c.l.b16 %v294
    %v883 = vunpack.c.h.b16 %v294
    %v884 = vunpack.c.l.b16 %v295
    %v885 = vunpack.c.h.b16 %v295
    %v886 = vunpack.c.l.b16 %v296
    %v887 = vunpack.c.h.b16 %v296
    %v888 = vunpack.c.l.b16 %v297
    %v889 = vunpack.c.h.b16 %v297
    %v890 = vunpack.c.l.b16 %v298
    %v891 = vunpack.c.h.b16 %v298
    %v892 = vunpack.c.l.b16 %v299
    %v893 = vunpack.c.h.b16 %v299
    %v894 = vunpack.c.l.b16 %v300
    %v895 = vunpack.c.h.b16 %v300
    %v896 = vunpack.c.l.b16 %v301
    %v897 = vunpack.c.h.b16 %v301
    %v898 = vunpack.c.l.b16 %v302
    %v899 = vunpack.c.h.b16 %v302
    %v900 = vunpack.c.l.b16 %v303
    %v901 = vunpack.c.h.b16 %v303
    %v902 = vpack.c.b16 %v514, %v510
    %v903 = vpack.c.b16 %v515, %v511
    %v904 = vpack.c.b16 %v516, %v512
    %v905 = vpack.c.b16 %v517, %v513
    %v906 = vpack.c.b16 %v522, %v518
    %v907 = vpack.c.b16 %v523, %v519
    %v908 = vpack.c.b16 %v524, %v520
    %v909 = vpack.c.b16 %v525, %v521
    %v910 = vpack.c.b16 %v530, %v526
    %v911 = vpack.c.b16 %v531, %v527
    %v912 = vpack.c.b16 %v532, %v528
    %v913 = vpack.c.b16 %v533, %v529
    %v914 = vpack.c.b16 %v538, %v534
    %v915 = vpack.c.b16 %v539, %v535
    %v916 = vpack.c.b16 %v540, %v536
    %v917 = vpack.c.b16 %v541, %v537
    %v918 = vpack.c.b16 %v546, %v542
    %v919 = vpack.c.b16 %v547, %v543
    %v920 = vpack.c.b16 %v548, %v544
    %v921 = vpack.c.b16 %v549, %v545
    %v922 = vpack.c.b16 %v554, %v550
    %v923 = vpack.c.b16 %v555, %v551
    %v924 = vpack.c.b16 %v556, %v552
    %v925 = vpack.c.b16 %v557, %v553
    %v926 = vpack.c.b16 %v562, %v558
    %v927 = vpack.c.b16 %v563, %v559
    %v928 = vpack.c.b16 %v564, %v560
    %v929 = vpack.c.b16 %v565, %v561
    %v930 = vpack.c.b16 %v570, %v566
    %v931 = vpack.c.b16 %v571, %v567
    %v932 = vpack.c.b16 %v572, %v568
    %v933 = vpack.c.b16 %v573, %v569
    %v934 = vpack.c.b16 %v578, %v574
    %v935 = vpack.c.b16 %v579, %v575
    %v936 = vpack.c.b16 %v580, %v576
    %v937 = vpack.c.b16 %v581, %v577
    %v938 = vpack.c.b16 %v586, %v582
    %v939 = vpack.c.b16 %v587, %v583
    %v940 = vpack.c.b16 %v588, %v584
    %v941 = vpack.c.b16 %v589, %v585
    %v942 = vpack.c.b16 %v594, %v590
    %v943 = vpack.c.b16 %v595, %v591
    %v944 = vpack.c.b16 %v596, %v592
    %v945 = vpack.c.b16 %v597, %v593
    %v946 = vpack.c.b16 %v602, %v598
    %v947 = vpack.c.b16 %v603, %v599
    %v948 = vpack.c.b16 %v604, %v600
    %v949 = vpack.c.b16 %v605, %v601
    %v950 = vpack.c.b16 %v610, %v606
    %v951 = vpack.c.b16 %v611, %v607
    %v952 = vpack.c.b16 %v612, %v608
    %v953 = vpack.c.b16 %v613, %v609
    %v954 = vpack.c.b16 %v618, %v614
    %v955 = vpack.c.b16 %v619, %v615
    %v956 = vpack.c.b16 %v620, %v616
    %v957 = vpack.c.b16 %v621, %v617
    %v958 = vpack.c.b16 %v626, %v622
    %v959 = vpack.c.b16 %v627, %v623
    %v960 = vpack.c.b16 %v628, %v624
    %v961 = vpack.c.b16 %v629, %v625
    %v962 = vpack.c.b16 %v634, %v630
    %v963 = vpack.c.b16 %v635, %v631
    %v964 = vpack.c.b16 %v636, %v632
    %v965 = vpack.c.b16 %v637, %v633
    %v966 = vpack.c.b16 %v642, %v638
    %v967 = vpack.c.b16 %v643, %v639
    %v968 = vpack.c.b16 %v644, %v640
    %v969 = vpack.c.b16 %v645, %v641
    %v970 = vpack.c.b16 %v650, %v646
    %v971 = vpack.c.b16 %v651, %v647
    %v972 = vpack.c.b16 %v652, %v648
    %v973 = vpack.c.b16 %v653, %v649
    %v974 = vpack.c.b16 %v658, %v654
    %v975 = vpack.c.b16 %v659, %v655
    %v976 = vpack.c.b16 %v660, %v656
    %v977 = vpack.c.b16 %v661, %v657
    %v978 = vpack.c.b16 %v666, %v662
    %v979 = vpack.c.b16 %v667, %v663
    %v980 = vpack.c.b16 %v668, %v664
    %v981 = vpack.c.b16 %v669, %v665
    %v982 = vpack.c.b16 %v674, %v670
    %v983 = vpack.c.b16 %v675, %v671
    %v984 = vpack.c.b16 %v676, %v672
    %v985 = vpack.c.b16 %v677, %v673
    %v986 = vpack.c.b16 %v682, %v678
    %v987 = vpack.c.b16 %v683, %v679
    %v988 = vpack.c.b16 %v684, %v680
    %v989 = vpack.c.b16 %v685, %v681
    %v990 = vpack.c.b16 %v690, %v686
    %v991 = vpack.c.b16 %v691, %v687
    %v992 = vpack.c.b16 %v692, %v688
    %v993 = vpack.c.b16 %v693, %v689
    %v994 = vpack.c.b16 %v698, %v694
    %v995 = vpack.c.b16 %v699, %v695
    %v996 = vpack.c.b16 %v700, %v696
    %v997 = vpack.c.b16 %v701, %v697
    %v998 = vpack.c.b16 %v706, %v702
    %v999 = vpack.c.b16 %v707, %v703
    %v1000 = vpack.c.b16 %v708, %v704
    %v1001 = vpack.c.b16 %v709, %v705
    %v1002 = vpack.c.b16 %v714, %v710
    %v1003 = vpack.c.b16 %v715, %v711
    %v1004 = vpack.c.b16 %v716, %v712
    %v1005 = vpack.c.b16 %v717, %v713
    %v1006 = vpack.c.b16 %v722, %v718
    %v1007 = vpack.c.b16 %v723, %v719
    %v1008 = vpack.c.b16 %v724, %v720
    %v1009 = vpack.c.b16 %v725, %v721
    %v1010 = vpack.c.b16 %v730, %v726
    %v1011 = vpack.c.b16 %v731, %v727
    %v1012 = vpack.c.b16 %v732, %v728
    %v1013 = vpack.c.b16 %v733, %v729
    %v1014 = vpack.c.b16 %v738, %v734
    %v1015 = vpack.c.b16 %v739, %v735
    %v1016 = vpack.c.b16 %v740, %v736
    %v1017 = vpack.c.b16 %v741, %v737
    %v1018 = vpack.c.b16 %v746, %v742
    %v1019 = vpack.c.b16 %v747, %v743
    %v1020 = vpack.c.b16 %v748, %v744
    %v1021 = vpack.c.b16 %v749, %v745
    %v1022 = vpack.c.b16 %v754, %v750
    %v1023 = vpack.c.b16 %v755, %v751
    %v1024 = vpack.c.b16 %v756, %v752
    %v1025 = vpack.c.b16 %v757, %v753
    %v1026 = vpack.c.b16 %v762, %v758
    %v1027 = vpack.c.b16 %v763, %v759
    %v1028 = vpack.c.b16 %v764, %v760
    %v1029 = vpack.c.b16 %v765, %v761
    %v1030 = vpack.c.b16 %v770, %v766
    %v1031 = vpack.c.b16 %v771, %v767
    %v1032 = vpack.c.b16 %v772, %v768
    %v1033 = vpack.c.b16 %v773, %v769
    %v1034 = vpack.c.b16 %v778, %v774
    %v1035 = vpack.c.b16 %v779, %v775
    %v1036 = vpack.c.b16 %v780, %v776
    %v1037 = vpack.c.b16 %v781, %v777
    %v1038 = vpack.c.b16 %v786, %v782
    %v1039 = vpack.c.b16 %v787, %v783
    %v1040 = vpack.c.b16 %v788, %v784
    %v1041 = vpack.c.b16 %v789, %v785
    %v1042 = vpack.c.b16 %v794, %v790
    %v1043 = vpack.c.b16 %v795, %v791
    %v1044 = vpack.c.b16 %v796, %v792
    %v1045 = vpack.c.b16 %v797, %v793
    %v1046 = vpack.c.b16 %v802, %v798
    %v1047 = vpack.c.b16 %v803, %v799
    %v1048 = vpack.c.b16 %v804, %v800
    %v1049 = vpack.c.b16 %v805, %v801
    %v1050 = vpack.c.b16 %v810, %v806
    %v1051 = vpack.c.b16 %v811, %v807
    %v1052 = vpack.c.b16 %v812, %v808
    %v1053 = vpack.c.b16 %v813, %v809
    %v1054 = vpack.c.b16 %v818, %v814
    %v1055 = vpack.c.b16 %v819, %v815
    %v1056 = vpack.c.b16 %v820, %v816
    %v1057 = vpack.c.b16 %v821, %v817
    %v1058 = vpack.c.b16 %v826, %v822
    %v1059 = vpack.c.b16 %v827, %v823
    %v1060 = vpack.c.b16 %v828, %v824
    %v1061 = vpack.c.b16 %v829, %v825
    %v1062 = vpack.c.b16 %v834, %v830
    %v1063 = vpack.c.b16 %v835, %v831
    %v1064 = vpack.c.b16 %v836, %v832
    %v1065 = vpack.c.b16 %v837, %v833
    %v1066 = vpack.c.b16 %v842, %v838
    %v1067 = vpack.c.b16 %v843, %v839
    %v1068 = vpack.c.b16 %v844, %v840
    %v1069 = vpack.c.b16 %v845, %v841
    %v1070 = vpack.c.b16 %v850, %v846
    %v1071 = vpack.c.b16 %v851, %v847
    %v1072 = vpack.c.b16 %v852, %v848
    %v1073 = vpack.c.b16 %v853, %v849
    %v1074 = vpack.c.b16 %v858, %v854
    %v1075 = vpack.c.b16 %v859, %v855
    %v1076 = vpack.c.b16 %v860, %v856
    %v1077 = vpack.c.b16 %v861, %v857
    %v1078 = vpack.c.b16 %v866, %v862
    %v1079 = vpack.c.b16 %v867, %v863
    %v1080 = vpack.c.b16 %v868, %v864
    %v1081 = vpack.c.b16 %v869, %v865
    %v1082 = vpack.c.b16 %v874, %v870
    %v1083 = vpack.c.b16 %v875, %v871
    %v1084 = vpack.c.b16 %v876, %v872
    %v1085 = vpack.c.b16 %v877, %v873
    %v1086 = vpack.c.b16 %v882, %v878
    %v1087 = vpack.c.b16 %v883, %v879
    %v1088 = vpack.c.b16 %v884, %v880
    %v1089 = vpack.c.b16 %v885, %v881
    %v1090 = vpack.c.b16 %v890, %v886
    %v1091 = vpack.c.b16 %v891, %v887
    %v1092 = vpack.c.b16 %v892, %v888
    %v1093 = vpack.c.b16 %v893, %v889
    %v1094 = vpack.c.b16 %v898, %v894
    %v1095 = vpack.c.b16 %v899, %v895
    %v1096 = vpack.c.b16 %v900, %v896
    %v1097 = vpack.c.b16 %v901, %v897
    %vm1294 = vcmask 130048
    %v1296 = vsel %vm1294, %v107, 0
    %1298 = vmatpush.bf16.msra.mxu0 %v930
    %1299 = vmatpush.bf16.msra.mxu0 %v926
    %1300 = vmatpush.bf16.msra.mxu0 %v922
    %1301 = vmatpush.bf16.msra.mxu0 %v918
    %1302 = vmatpush.bf16.msra.mxu0 %v914
    %1303 = vmatpush.bf16.msra.mxu0 %v910
    %1304 = vmatpush.bf16.msra.mxu0 %v906
    %1305 = vmatpush.bf16.msra.mxu0 %v902
    %1306 = vmatmul.bf16.gmra.mxu0 %v101
    %v1307 = vpop.f32.mrf.mxu0
    %v1308 = vadd.f32 %v306, %v1307
    %v1309 = vpop.f32.mrf.mxu0
    %1310 = vdwg.mxu0
    %1311 = vmatpush.bf16.msra.mxu0 %v962
    %1312 = vmatpush.bf16.msra.mxu0 %v958
    %1313 = vmatpush.bf16.msra.mxu0 %v954
    %1314 = vmatpush.bf16.msra.mxu0 %v950
    %1315 = vmatpush.bf16.msra.mxu0 %v946
    %1316 = vmatpush.bf16.msra.mxu0 %v942
    %1317 = vmatpush.bf16.msra.mxu0 %v938
    %1318 = vmatpush.bf16.msra.mxu0 %v934
    %1319 = vmatmul.bf16.gmra.mxu0 %v102
    %v1320 = vpop.f32.mrf.mxu0
    %v1321 = vadd.f32 %v1308, %v1320
    %v1322 = vpop.f32.mrf.mxu0
    %1323 = vdwg.mxu0
    %1324 = vmatpush.bf16.msra.mxu0 %v994
    %1325 = vmatpush.bf16.msra.mxu0 %v990
    %1326 = vmatpush.bf16.msra.mxu0 %v986
    %1327 = vmatpush.bf16.msra.mxu0 %v982
    %1328 = vmatpush.bf16.msra.mxu0 %v978
    %1329 = vmatpush.bf16.msra.mxu0 %v974
    %1330 = vmatpush.bf16.msra.mxu0 %v970
    %1331 = vmatpush.bf16.msra.mxu0 %v966
    %1332 = vmatmul.bf16.gmra.mxu0 %v103
    %v1333 = vpop.f32.mrf.mxu0
    %v1334 = vadd.f32 %v1321, %v1333
    %v1335 = vpop.f32.mrf.mxu0
    %1336 = vdwg.mxu0
    %1337 = vmatpush.bf16.msra.mxu0 %v1026
    %1338 = vmatpush.bf16.msra.mxu0 %v1022
    %1339 = vmatpush.bf16.msra.mxu0 %v1018
    %1340 = vmatpush.bf16.msra.mxu0 %v1014
    %1341 = vmatpush.bf16.msra.mxu0 %v1010
    %1342 = vmatpush.bf16.msra.mxu0 %v1006
    %1343 = vmatpush.bf16.msra.mxu0 %v1002
    %1344 = vmatpush.bf16.msra.mxu0 %v998
    %1345 = vmatmul.bf16.gmra.mxu0 %v104
    %v1346 = vpop.f32.mrf.mxu0
    %v1347 = vadd.f32 %v1334, %v1346
    %v1348 = vpop.f32.mrf.mxu0
    %1349 = vdwg.mxu0
    %1350 = vmatpush.bf16.msra.mxu0 %v1058
    %1351 = vmatpush.bf16.msra.mxu0 %v1054
    %1352 = vmatpush.bf16.msra.mxu0 %v1050
    %1353 = vmatpush.bf16.msra.mxu0 %v1046
    %1354 = vmatpush.bf16.msra.mxu0 %v1042
    %1355 = vmatpush.bf16.msra.mxu0 %v1038
    %1356 = vmatpush.bf16.msra.mxu0 %v1034
    %1357 = vmatpush.bf16.msra.mxu0 %v1030
    %1358 = vmatmul.bf16.gmra.mxu0 %v105
    %v1359 = vpop.f32.mrf.mxu0
    %v1360 = vadd.f32 %v1347, %v1359
    %v1361 = vpop.f32.mrf.mxu0
    %1362 = vdwg.mxu0
    %1363 = vmatpush.bf16.msra.mxu0 %v1090
    %1364 = vmatpush.bf16.msra.mxu0 %v1086
    %1365 = vmatpush.bf16.msra.mxu0 %v1082
    %1366 = vmatpush.bf16.msra.mxu0 %v1078
    %1367 = vmatpush.bf16.msra.mxu0 %v1074
    %1368 = vmatpush.bf16.msra.mxu0 %v1070
    %1369 = vmatpush.bf16.msra.mxu0 %v1066
    %1370 = vmatpush.bf16.msra.mxu0 %v1062
    %1371 = vmatmul.bf16.gmra.mxu0 %v106
    %v1372 = vpop.f32.mrf.mxu0
    %v1373 = vadd.f32 %v1360, %v1372
    %v1374 = vpop.f32.mrf.mxu0
    %1375 = vdwg.mxu0
    %1376 = vmatpush.bf16.msra.mxu0 0
    %1377 = vmatpush.bf16.msra.mxu0 0
    %1378 = vmatpush.bf16.msra.mxu0 0
    %1379 = vmatpush.bf16.msra.mxu0 0
    %1380 = vmatpush.bf16.msra.mxu0 0
    %1381 = vmatpush.bf16.msra.mxu0 0
    %1382 = vmatpush.bf16.msra.mxu0 0
    %1383 = vmatpush.bf16.msra.mxu0 %v1094
    %1384 = vmatmul.bf16.gmra.mxu0 %v1296
    %v1385 = vpop.f32.mrf.mxu0
    %v1386 = vadd.f32 %v1373, %v1385
    %v1387 = vpop.f32.mrf.mxu0
    %1388 = vdwg.mxu0
    %1389 = vmatpush.bf16.msra.mxu0 %v931
    %1390 = vmatpush.bf16.msra.mxu0 %v927
    %1391 = vmatpush.bf16.msra.mxu0 %v923
    %1392 = vmatpush.bf16.msra.mxu0 %v919
    %1393 = vmatpush.bf16.msra.mxu0 %v915
    %1394 = vmatpush.bf16.msra.mxu0 %v911
    %1395 = vmatpush.bf16.msra.mxu0 %v907
    %1396 = vmatpush.bf16.msra.mxu0 %v903
    %1397 = vmatmul.bf16.gmra.mxu0 %v101
    %v1398 = vpop.f32.mrf.mxu0
    %v1399 = vadd.f32 %v307, %v1398
    %v1400 = vpop.f32.mrf.mxu0
    %1401 = vdwg.mxu0
    %1402 = vmatpush.bf16.msra.mxu0 %v963
    %1403 = vmatpush.bf16.msra.mxu0 %v959
    %1404 = vmatpush.bf16.msra.mxu0 %v955
    %1405 = vmatpush.bf16.msra.mxu0 %v951
    %1406 = vmatpush.bf16.msra.mxu0 %v947
    %1407 = vmatpush.bf16.msra.mxu0 %v943
    %1408 = vmatpush.bf16.msra.mxu0 %v939
    %1409 = vmatpush.bf16.msra.mxu0 %v935
    %1410 = vmatmul.bf16.gmra.mxu0 %v102
    %v1411 = vpop.f32.mrf.mxu0
    %v1412 = vadd.f32 %v1399, %v1411
    %v1413 = vpop.f32.mrf.mxu0
    %1414 = vdwg.mxu0
    %1415 = vmatpush.bf16.msra.mxu0 %v995
    %1416 = vmatpush.bf16.msra.mxu0 %v991
    %1417 = vmatpush.bf16.msra.mxu0 %v987
    %1418 = vmatpush.bf16.msra.mxu0 %v983
    %1419 = vmatpush.bf16.msra.mxu0 %v979
    %1420 = vmatpush.bf16.msra.mxu0 %v975
    %1421 = vmatpush.bf16.msra.mxu0 %v971
    %1422 = vmatpush.bf16.msra.mxu0 %v967
    %1423 = vmatmul.bf16.gmra.mxu0 %v103
    %v1424 = vpop.f32.mrf.mxu0
    %v1425 = vadd.f32 %v1412, %v1424
    %v1426 = vpop.f32.mrf.mxu0
    %1427 = vdwg.mxu0
    %1428 = vmatpush.bf16.msra.mxu0 %v1027
    %1429 = vmatpush.bf16.msra.mxu0 %v1023
    %1430 = vmatpush.bf16.msra.mxu0 %v1019
    %1431 = vmatpush.bf16.msra.mxu0 %v1015
    %1432 = vmatpush.bf16.msra.mxu0 %v1011
    %1433 = vmatpush.bf16.msra.mxu0 %v1007
    %1434 = vmatpush.bf16.msra.mxu0 %v1003
    %1435 = vmatpush.bf16.msra.mxu0 %v999
    %1436 = vmatmul.bf16.gmra.mxu0 %v104
    %v1437 = vpop.f32.mrf.mxu0
    %v1438 = vadd.f32 %v1425, %v1437
    %v1439 = vpop.f32.mrf.mxu0
    %1440 = vdwg.mxu0
    %1441 = vmatpush.bf16.msra.mxu0 %v1059
    %1442 = vmatpush.bf16.msra.mxu0 %v1055
    %1443 = vmatpush.bf16.msra.mxu0 %v1051
    %1444 = vmatpush.bf16.msra.mxu0 %v1047
    %1445 = vmatpush.bf16.msra.mxu0 %v1043
    %1446 = vmatpush.bf16.msra.mxu0 %v1039
    %1447 = vmatpush.bf16.msra.mxu0 %v1035
    %1448 = vmatpush.bf16.msra.mxu0 %v1031
    %1449 = vmatmul.bf16.gmra.mxu0 %v105
    %v1450 = vpop.f32.mrf.mxu0
    %v1451 = vadd.f32 %v1438, %v1450
    %v1452 = vpop.f32.mrf.mxu0
    %1453 = vdwg.mxu0
    %1454 = vmatpush.bf16.msra.mxu0 %v1091
    %1455 = vmatpush.bf16.msra.mxu0 %v1087
    %1456 = vmatpush.bf16.msra.mxu0 %v1083
    %1457 = vmatpush.bf16.msra.mxu0 %v1079
    %1458 = vmatpush.bf16.msra.mxu0 %v1075
    %1459 = vmatpush.bf16.msra.mxu0 %v1071
    %1460 = vmatpush.bf16.msra.mxu0 %v1067
    %1461 = vmatpush.bf16.msra.mxu0 %v1063
    %1462 = vmatmul.bf16.gmra.mxu0 %v106
    %v1463 = vpop.f32.mrf.mxu0
    %v1464 = vadd.f32 %v1451, %v1463
    %v1465 = vpop.f32.mrf.mxu0
    %1466 = vdwg.mxu0
    %1467 = vmatpush.bf16.msra.mxu0 0
    %1468 = vmatpush.bf16.msra.mxu0 0
    %1469 = vmatpush.bf16.msra.mxu0 0
    %1470 = vmatpush.bf16.msra.mxu0 0
    %1471 = vmatpush.bf16.msra.mxu0 0
    %1472 = vmatpush.bf16.msra.mxu0 0
    %1473 = vmatpush.bf16.msra.mxu0 0
    %1474 = vmatpush.bf16.msra.mxu0 %v1095
    %1475 = vmatmul.bf16.gmra.mxu0 %v1296
    %v1476 = vpop.f32.mrf.mxu0
    %v1477 = vadd.f32 %v1464, %v1476
    %v1478 = vpop.f32.mrf.mxu0
    %1479 = vdwg.mxu0
    %1480 = vmatpush.bf16.msra.mxu0 %v932
    %1481 = vmatpush.bf16.msra.mxu0 %v928
    %1482 = vmatpush.bf16.msra.mxu0 %v924
    %1483 = vmatpush.bf16.msra.mxu0 %v920
    %1484 = vmatpush.bf16.msra.mxu0 %v916
    %1485 = vmatpush.bf16.msra.mxu0 %v912
    %1486 = vmatpush.bf16.msra.mxu0 %v908
    %1487 = vmatpush.bf16.msra.mxu0 %v904
    %1488 = vmatmul.bf16.gmra.mxu0 %v101
    %v1489 = vpop.f32.mrf.mxu0
    %v1490 = vadd.f32 %v308, %v1489
    %v1491 = vpop.f32.mrf.mxu0
    %1492 = vdwg.mxu0
    %1493 = vmatpush.bf16.msra.mxu0 %v964
    %1494 = vmatpush.bf16.msra.mxu0 %v960
    %1495 = vmatpush.bf16.msra.mxu0 %v956
    %1496 = vmatpush.bf16.msra.mxu0 %v952
    %1497 = vmatpush.bf16.msra.mxu0 %v948
    %1498 = vmatpush.bf16.msra.mxu0 %v944
    %1499 = vmatpush.bf16.msra.mxu0 %v940
    %1500 = vmatpush.bf16.msra.mxu0 %v936
    %1501 = vmatmul.bf16.gmra.mxu0 %v102
    %v1502 = vpop.f32.mrf.mxu0
    %v1503 = vadd.f32 %v1490, %v1502
    %v1504 = vpop.f32.mrf.mxu0
    %1505 = vdwg.mxu0
    %1506 = vmatpush.bf16.msra.mxu0 %v996
    %1507 = vmatpush.bf16.msra.mxu0 %v992
    %1508 = vmatpush.bf16.msra.mxu0 %v988
    %1509 = vmatpush.bf16.msra.mxu0 %v984
    %1510 = vmatpush.bf16.msra.mxu0 %v980
    %1511 = vmatpush.bf16.msra.mxu0 %v976
    %1512 = vmatpush.bf16.msra.mxu0 %v972
    %1513 = vmatpush.bf16.msra.mxu0 %v968
    %1514 = vmatmul.bf16.gmra.mxu0 %v103
    %v1515 = vpop.f32.mrf.mxu0
    %v1516 = vadd.f32 %v1503, %v1515
    %v1517 = vpop.f32.mrf.mxu0
    %1518 = vdwg.mxu0
    %1519 = vmatpush.bf16.msra.mxu0 %v1028
    %1520 = vmatpush.bf16.msra.mxu0 %v1024
    %1521 = vmatpush.bf16.msra.mxu0 %v1020
    %1522 = vmatpush.bf16.msra.mxu0 %v1016
    %1523 = vmatpush.bf16.msra.mxu0 %v1012
    %1524 = vmatpush.bf16.msra.mxu0 %v1008
    %1525 = vmatpush.bf16.msra.mxu0 %v1004
    %1526 = vmatpush.bf16.msra.mxu0 %v1000
    %1527 = vmatmul.bf16.gmra.mxu0 %v104
    %v1528 = vpop.f32.mrf.mxu0
    %v1529 = vadd.f32 %v1516, %v1528
    %v1530 = vpop.f32.mrf.mxu0
    %1531 = vdwg.mxu0
    %1532 = vmatpush.bf16.msra.mxu0 %v1060
    %1533 = vmatpush.bf16.msra.mxu0 %v1056
    %1534 = vmatpush.bf16.msra.mxu0 %v1052
    %1535 = vmatpush.bf16.msra.mxu0 %v1048
    %1536 = vmatpush.bf16.msra.mxu0 %v1044
    %1537 = vmatpush.bf16.msra.mxu0 %v1040
    %1538 = vmatpush.bf16.msra.mxu0 %v1036
    %1539 = vmatpush.bf16.msra.mxu0 %v1032
    %1540 = vmatmul.bf16.gmra.mxu0 %v105
    %v1541 = vpop.f32.mrf.mxu0
    %v1542 = vadd.f32 %v1529, %v1541
    %v1543 = vpop.f32.mrf.mxu0
    %1544 = vdwg.mxu0
    %1545 = vmatpush.bf16.msra.mxu0 %v1092
    %1546 = vmatpush.bf16.msra.mxu0 %v1088
    %1547 = vmatpush.bf16.msra.mxu0 %v1084
    %1548 = vmatpush.bf16.msra.mxu0 %v1080
    %1549 = vmatpush.bf16.msra.mxu0 %v1076
    %1550 = vmatpush.bf16.msra.mxu0 %v1072
    %1551 = vmatpush.bf16.msra.mxu0 %v1068
    %1552 = vmatpush.bf16.msra.mxu0 %v1064
    %1553 = vmatmul.bf16.gmra.mxu0 %v106
    %v1554 = vpop.f32.mrf.mxu0
    %v1555 = vadd.f32 %v1542, %v1554
    %v1556 = vpop.f32.mrf.mxu0
    %1557 = vdwg.mxu0
    %1558 = vmatpush.bf16.msra.mxu0 0
    %1559 = vmatpush.bf16.msra.mxu0 0
    %1560 = vmatpush.bf16.msra.mxu0 0
    %1561 = vmatpush.bf16.msra.mxu0 0
    %1562 = vmatpush.bf16.msra.mxu0 0
    %1563 = vmatpush.bf16.msra.mxu0 0
    %1564 = vmatpush.bf16.msra.mxu0 0
    %1565 = vmatpush.bf16.msra.mxu0 %v1096
    %1566 = vmatmul.bf16.gmra.mxu0 %v1296
    %v1567 = vpop.f32.mrf.mxu0
    %v1568 = vadd.f32 %v1555, %v1567
    %v1569 = vpop.f32.mrf.mxu0
    %1570 = vdwg.mxu0
    %1571 = vmatpush.bf16.msra.mxu0 %v933
    %1572 = vmatpush.bf16.msra.mxu0 %v929
    %1573 = vmatpush.bf16.msra.mxu0 %v925
    %1574 = vmatpush.bf16.msra.mxu0 %v921
    %1575 = vmatpush.bf16.msra.mxu0 %v917
    %1576 = vmatpush.bf16.msra.mxu0 %v913
    %1577 = vmatpush.bf16.msra.mxu0 %v909
    %1578 = vmatpush.bf16.msra.mxu0 %v905
    %1579 = vmatmul.bf16.gmra.mxu0 %v101
    %v1580 = vpop.f32.mrf.mxu0
    %v1581 = vadd.f32 %v309, %v1580
    %v1582 = vpop.f32.mrf.mxu0
    %1583 = vdwg.mxu0
    %1584 = vmatpush.bf16.msra.mxu0 %v965
    %1585 = vmatpush.bf16.msra.mxu0 %v961
    %1586 = vmatpush.bf16.msra.mxu0 %v957
    %1587 = vmatpush.bf16.msra.mxu0 %v953
    %1588 = vmatpush.bf16.msra.mxu0 %v949
    %1589 = vmatpush.bf16.msra.mxu0 %v945
    %1590 = vmatpush.bf16.msra.mxu0 %v941
    %1591 = vmatpush.bf16.msra.mxu0 %v937
    %1592 = vmatmul.bf16.gmra.mxu0 %v102
    %v1593 = vpop.f32.mrf.mxu0
    %v1594 = vadd.f32 %v1581, %v1593
    %v1595 = vpop.f32.mrf.mxu0
    %1596 = vdwg.mxu0
    %1597 = vmatpush.bf16.msra.mxu0 %v997
    %1598 = vmatpush.bf16.msra.mxu0 %v993
    %1599 = vmatpush.bf16.msra.mxu0 %v989
    %1600 = vmatpush.bf16.msra.mxu0 %v985
    %1601 = vmatpush.bf16.msra.mxu0 %v981
    %1602 = vmatpush.bf16.msra.mxu0 %v977
    %1603 = vmatpush.bf16.msra.mxu0 %v973
    %1604 = vmatpush.bf16.msra.mxu0 %v969
    %1605 = vmatmul.bf16.gmra.mxu0 %v103
    %v1606 = vpop.f32.mrf.mxu0
    %v1607 = vadd.f32 %v1594, %v1606
    %v1608 = vpop.f32.mrf.mxu0
    %1609 = vdwg.mxu0
    %1610 = vmatpush.bf16.msra.mxu0 %v1029
    %1611 = vmatpush.bf16.msra.mxu0 %v1025
    %1612 = vmatpush.bf16.msra.mxu0 %v1021
    %1613 = vmatpush.bf16.msra.mxu0 %v1017
    %1614 = vmatpush.bf16.msra.mxu0 %v1013
    %1615 = vmatpush.bf16.msra.mxu0 %v1009
    %1616 = vmatpush.bf16.msra.mxu0 %v1005
    %1617 = vmatpush.bf16.msra.mxu0 %v1001
    %1618 = vmatmul.bf16.gmra.mxu0 %v104
    %v1619 = vpop.f32.mrf.mxu0
    %v1620 = vadd.f32 %v1607, %v1619
    %v1621 = vpop.f32.mrf.mxu0
    %1622 = vdwg.mxu0
    %1623 = vmatpush.bf16.msra.mxu0 %v1061
    %1624 = vmatpush.bf16.msra.mxu0 %v1057
    %1625 = vmatpush.bf16.msra.mxu0 %v1053
    %1626 = vmatpush.bf16.msra.mxu0 %v1049
    %1627 = vmatpush.bf16.msra.mxu0 %v1045
    %1628 = vmatpush.bf16.msra.mxu0 %v1041
    %1629 = vmatpush.bf16.msra.mxu0 %v1037
    %1630 = vmatpush.bf16.msra.mxu0 %v1033
    %1631 = vmatmul.bf16.gmra.mxu0 %v105
    %v1632 = vpop.f32.mrf.mxu0
    %v1633 = vadd.f32 %v1620, %v1632
    %v1634 = vpop.f32.mrf.mxu0
    %1635 = vdwg.mxu0
    %1636 = vmatpush.bf16.msra.mxu0 %v1093
    %1637 = vmatpush.bf16.msra.mxu0 %v1089
    %1638 = vmatpush.bf16.msra.mxu0 %v1085
    %1639 = vmatpush.bf16.msra.mxu0 %v1081
    %1640 = vmatpush.bf16.msra.mxu0 %v1077
    %1641 = vmatpush.bf16.msra.mxu0 %v1073
    %1642 = vmatpush.bf16.msra.mxu0 %v1069
    %1643 = vmatpush.bf16.msra.mxu0 %v1065
    %1644 = vmatmul.bf16.gmra.mxu0 %v106
    %v1645 = vpop.f32.mrf.mxu0
    %v1646 = vadd.f32 %v1633, %v1645
    %v1647 = vpop.f32.mrf.mxu0
    %1648 = vdwg.mxu0
    %1649 = vmatpush.bf16.msra.mxu0 0
    %1650 = vmatpush.bf16.msra.mxu0 0
    %1651 = vmatpush.bf16.msra.mxu0 0
    %1652 = vmatpush.bf16.msra.mxu0 0
    %1653 = vmatpush.bf16.msra.mxu0 0
    %1654 = vmatpush.bf16.msra.mxu0 0
    %1655 = vmatpush.bf16.msra.mxu0 0
    %1656 = vmatpush.bf16.msra.mxu0 %v1097
    %1657 = vmatmul.bf16.gmra.mxu0 %v1296
    %v1658 = vpop.f32.mrf.mxu0
    %v1659 = vadd.f32 %v1646, %v1658
    %v1660 = vpop.f32.mrf.mxu0
    %1661 = vdwg.mxu0
    %v1662 = vmax.f32 %v1386, 0.0
    %v1663 = vmax.f32 %v1477, 0.0
    %v1664 = vmax.f32 %v1568, 0.0
    %v1665 = vmax.f32 %v1659, 0.0
    %v1666 = vpack.c.bf16 %v1662, %v1662
    %v1667 = vpack.c.bf16 %v1663, %v1663
    %v1668 = vpack.c.bf16 %v1664, %v1664
    %v1669 = vpack.c.bf16 %v1665, %v1665
    %v1670 = vld [vmem:[#allocation8] sm:$0xff]
    %v1671 = vld [vmem:[#allocation8 + $0x8] sm:$0xff]
    %v1672 = vld [vmem:[#allocation8 + $0x10] sm:$0xff]
    %v1673 = vld [vmem:[#allocation8 + $0x18] sm:$0xf]
    %v1674 = vld [vmem:[#allocation8 + $0x1c] sm:$0xff]
    %v1675 = vld [vmem:[#allocation8 + $0x24] sm:$0xff]
    %v1676 = vld [vmem:[#allocation8 + $0x2c] sm:$0xff]
    %v1677 = vld [vmem:[#allocation8 + $0x34] sm:$0xf]
    %v1678 = vld [vmem:[#allocation8 + $0x38] sm:$0xff]
    %v1679 = vld [vmem:[#allocation8 + $0x40] sm:$0xff]
    %v1680 = vld [vmem:[#allocation8 + $0x48] sm:$0xff]
    %v1681 = vld [vmem:[#allocation8 + $0x50] sm:$0xf]
    %v1682 = vld [vmem:[#allocation8 + $0x54] sm:$0xff]
    %v1683 = vld [vmem:[#allocation8 + $0x5c] sm:$0xff]
    %v1684 = vld [vmem:[#allocation8 + $0x64] sm:$0xff]
    %v1685 = vld [vmem:[#allocation8 + $0x6c] sm:$0xf]
    %v1686 = vld [vmem:[#allocation8 + $0x70] sm:$0xff]
    %v1687 = vld [vmem:[#allocation8 + $0x78] sm:$0xff]
    %v1688 = vld [vmem:[#allocation8 + $0x80] sm:$0xff]
    %v1689 = vld [vmem:[#allocation8 + $0x88] sm:$0xf]
    %v1690 = vld [vmem:[#allocation8 + $0x8c] sm:$0xff]
    %v1691 = vld [vmem:[#allocation8 + $0x94] sm:$0xff]
    %v1692 = vld [vmem:[#allocation8 + $0x9c] sm:$0xff]
    %v1693 = vld [vmem:[#allocation8 + $0xa4] sm:$0xf]
    %v1694 = vld [vmem:[#allocation8 + $0xa8] sm:$0xff]
    %v1695 = vld [vmem:[#allocation8 + $0xb0] sm:$0xff]
    %v1696 = vld [vmem:[#allocation8 + $0xb8] sm:$0xff]
    %v1697 = vld [vmem:[#allocation8 + $0xc0] sm:$0xf]
    %v1698 = vld [vmem:[#allocation8 + $0xc4] sm:$0xff]
    %v1699 = vld [vmem:[#allocation8 + $0xcc] sm:$0xff]
    %v1700 = vld [vmem:[#allocation8 + $0xd4] sm:$0xff]
    %v1701 = vld [vmem:[#allocation8 + $0xdc] sm:$0xf]
    %v1702 = vld [vmem:[#allocation8 + $0xe0] sm:$0xff]
    %v1703 = vld [vmem:[#allocation8 + $0xe8] sm:$0xff]
    %v1704 = vld [vmem:[#allocation8 + $0xf0] sm:$0xff]
    %v1705 = vld [vmem:[#allocation8 + $0xf8] sm:$0xf]
    %v1706 = vld [vmem:[#allocation8 + $0xfc] sm:$0xff]
    %v1707 = vld [vmem:[#allocation8 + $0x104] sm:$0xff]
    %v1708 = vld [vmem:[#allocation8 + $0x10c] sm:$0xff]
    %v1709 = vld [vmem:[#allocation8 + $0x114] sm:$0xf]
    %v1710 = vld [vmem:[#allocation8 + $0x118] sm:$0xff]
    %v1711 = vld [vmem:[#allocation8 + $0x120] sm:$0xff]
    %v1712 = vld [vmem:[#allocation8 + $0x128] sm:$0xff]
    %v1713 = vld [vmem:[#allocation8 + $0x130] sm:$0xf]
    %v1714 = vld [vmem:[#allocation8 + $0x134] sm:$0xff]
    %v1715 = vld [vmem:[#allocation8 + $0x13c] sm:$0xff]
    %v1716 = vld [vmem:[#allocation8 + $0x144] sm:$0xff]
    %v1717 = vld [vmem:[#allocation8 + $0x14c] sm:$0xf]
    %v1718 = vld [vmem:[#allocation8 + $0x150] sm:$0xff]
    %v1719 = vld [vmem:[#allocation8 + $0x158] sm:$0xff]
    %v1720 = vld [vmem:[#allocation8 + $0x160] sm:$0xff]
    %v1721 = vld [vmem:[#allocation8 + $0x168] sm:$0xf]
    %v1722 = vld [vmem:[#allocation8 + $0x16c] sm:$0xff]
    %v1723 = vld [vmem:[#allocation8 + $0x174] sm:$0xff]
    %v1724 = vld [vmem:[#allocation8 + $0x17c] sm:$0xff]
    %v1725 = vld [vmem:[#allocation8 + $0x184] sm:$0xf]
    %v1726 = vld [vmem:[#allocation8 + $0x188] sm:$0xff]
    %v1727 = vld [vmem:[#allocation8 + $0x190] sm:$0xff]
    %v1728 = vld [vmem:[#allocation8 + $0x198] sm:$0xff]
    %v1729 = vld [vmem:[#allocation8 + $0x1a0] sm:$0xf]
    %v1730 = vld [vmem:[#allocation8 + $0x1a4] sm:$0xff]
    %v1731 = vld [vmem:[#allocation8 + $0x1ac] sm:$0xff]
    %v1732 = vld [vmem:[#allocation8 + $0x1b4] sm:$0xff]
    %v1733 = vld [vmem:[#allocation8 + $0x1bc] sm:$0xf]
    %v1734 = vld [vmem:[#allocation8 + $0x1c0] sm:$0xff]
    %v1735 = vld [vmem:[#allocation8 + $0x1c8] sm:$0xff]
    %v1736 = vld [vmem:[#allocation8 + $0x1d0] sm:$0xff]
    %v1737 = vld [vmem:[#allocation8 + $0x1d8] sm:$0xf]
    %v1738 = vld [vmem:[#allocation8 + $0x1dc] sm:$0xff]
    %v1739 = vld [vmem:[#allocation8 + $0x1e4] sm:$0xff]
    %v1740 = vld [vmem:[#allocation8 + $0x1ec] sm:$0xff]
    %v1741 = vld [vmem:[#allocation8 + $0x1f4] sm:$0xf]
    %v1742 = vld [vmem:[#allocation8 + $0x1f8] sm:$0xff]
    %v1743 = vld [vmem:[#allocation8 + $0x200] sm:$0xff]
    %v1744 = vld [vmem:[#allocation8 + $0x208] sm:$0xff]
    %v1745 = vld [vmem:[#allocation8 + $0x210] sm:$0xf]
    %v1746 = vld [vmem:[#allocation8 + $0x214] sm:$0xff]
    %v1747 = vld [vmem:[#allocation8 + $0x21c] sm:$0xff]
    %v1748 = vld [vmem:[#allocation8 + $0x224] sm:$0xff]
    %v1749 = vld [vmem:[#allocation8 + $0x22c] sm:$0xf]
    %v1750 = vld [vmem:[#allocation8 + $0x230] sm:$0xff]
    %v1751 = vld [vmem:[#allocation8 + $0x238] sm:$0xff]
    %v1752 = vld [vmem:[#allocation8 + $0x240] sm:$0xff]
    %v1753 = vld [vmem:[#allocation8 + $0x248] sm:$0xf]
    %v1754 = vld [vmem:[#allocation8 + $0x24c] sm:$0xff]
    %v1755 = vld [vmem:[#allocation8 + $0x254] sm:$0xff]
    %v1756 = vld [vmem:[#allocation8 + $0x25c] sm:$0xff]
    %v1757 = vld [vmem:[#allocation8 + $0x264] sm:$0xf]
    %v1758 = vld [vmem:[#allocation8 + $0x268] sm:$0xff]
    %v1759 = vld [vmem:[#allocation8 + $0x270] sm:$0xff]
    %v1760 = vld [vmem:[#allocation8 + $0x278] sm:$0xff]
    %v1761 = vld [vmem:[#allocation8 + $0x280] sm:$0xf]
    %v1762 = vld [vmem:[#allocation8 + $0x284] sm:$0xff]
    %v1763 = vld [vmem:[#allocation8 + $0x28c] sm:$0xff]
    %v1764 = vld [vmem:[#allocation8 + $0x294] sm:$0xff]
    %v1765 = vld [vmem:[#allocation8 + $0x29c] sm:$0xf]
    %v1766 = vld [vmem:[#allocation8 + $0x2a0] sm:$0xff]
    %v1767 = vld [vmem:[#allocation8 + $0x2a8] sm:$0xff]
    %v1768 = vld [vmem:[#allocation8 + $0x2b0] sm:$0xff]
    %v1769 = vld [vmem:[#allocation8 + $0x2b8] sm:$0xf]
    %v1770 = vld [vmem:[#allocation8 + $0x2bc] sm:$0xff]
    %v1771 = vld [vmem:[#allocation8 + $0x2c4] sm:$0xff]
    %v1772 = vld [vmem:[#allocation8 + $0x2cc] sm:$0xff]
    %v1773 = vld [vmem:[#allocation8 + $0x2d4] sm:$0xf]
    %v1774 = vld [vmem:[#allocation8 + $0x2d8] sm:$0xff]
    %v1775 = vld [vmem:[#allocation8 + $0x2e0] sm:$0xff]
    %v1776 = vld [vmem:[#allocation8 + $0x2e8] sm:$0xff]
    %v1777 = vld [vmem:[#allocation8 + $0x2f0] sm:$0xf]
    %v1778 = vld [vmem:[#allocation8 + $0x2f4] sm:$0xff]
    %v1779 = vld [vmem:[#allocation8 + $0x2fc] sm:$0xff]
    %v1780 = vld [vmem:[#allocation8 + $0x304] sm:$0xff]
    %v1781 = vld [vmem:[#allocation8 + $0x30c] sm:$0xf]
    %v1782 = vld [vmem:[#allocation8 + $0x310] sm:$0xff]
    %v1783 = vld [vmem:[#allocation8 + $0x318] sm:$0xff]
    %v1784 = vld [vmem:[#allocation8 + $0x320] sm:$0xff]
    %v1785 = vld [vmem:[#allocation8 + $0x328] sm:$0xf]
    %v1786 = vld [vmem:[#allocation8 + $0x32c] sm:$0xff]
    %v1787 = vld [vmem:[#allocation8 + $0x334] sm:$0xff]
    %v1788 = vld [vmem:[#allocation8 + $0x33c] sm:$0xff]
    %v1789 = vld [vmem:[#allocation8 + $0x344] sm:$0xf]
    %v1790 = vld [vmem:[#allocation8 + $0x348] sm:$0xff]
    %v1791 = vld [vmem:[#allocation8 + $0x350] sm:$0xff]
    %v1792 = vld [vmem:[#allocation8 + $0x358] sm:$0xff]
    %v1793 = vld [vmem:[#allocation8 + $0x360] sm:$0xf]
    %v1794 = vld [vmem:[#allocation8 + $0x364] sm:$0xff]
    %v1795 = vld [vmem:[#allocation8 + $0x36c] sm:$0xff]
    %v1796 = vld [vmem:[#allocation8 + $0x374] sm:$0xff]
    %v1797 = vld [vmem:[#allocation8 + $0x37c] sm:$0xf]
    %v1798 = vld [vmem:[#allocation8 + $0x380] sm:$0xff]
    %v1799 = vld [vmem:[#allocation8 + $0x388] sm:$0xff]
    %v1800 = vld [vmem:[#allocation8 + $0x390] sm:$0xff]
    %v1801 = vld [vmem:[#allocation8 + $0x398] sm:$0xf]
    %v1802 = vld [vmem:[#allocation8 + $0x39c] sm:$0xff]
    %v1803 = vld [vmem:[#allocation8 + $0x3a4] sm:$0xff]
    %v1804 = vld [vmem:[#allocation8 + $0x3ac] sm:$0xff]
    %v1805 = vld [vmem:[#allocation8 + $0x3b4] sm:$0xf]
    %v1806 = vld [vmem:[#allocation8 + $0x3b8] sm:$0xff]
    %v1807 = vld [vmem:[#allocation8 + $0x3c0] sm:$0xff]
    %v1808 = vld [vmem:[#allocation8 + $0x3c8] sm:$0xff]
    %v1809 = vld [vmem:[#allocation8 + $0x3d0] sm:$0xf]
    %v1810 = vld [vmem:[#allocation8 + $0x3d4] sm:$0xff]
    %v1811 = vld [vmem:[#allocation8 + $0x3dc] sm:$0xff]
    %v1812 = vld [vmem:[#allocation8 + $0x3e4] sm:$0xff]
    %v1813 = vld [vmem:[#allocation8 + $0x3ec] sm:$0xf]
    %v1814 = vld [vmem:[#allocation8 + $0x3f0] sm:$0xff]
    %v1815 = vld [vmem:[#allocation8 + $0x3f8] sm:$0xff]
    %v1816 = vld [vmem:[#allocation8 + $0x400] sm:$0xff]
    %v1817 = vld [vmem:[#allocation8 + $0x408] sm:$0xf]
    %v1818 = vld [vmem:[#allocation8 + $0x40c] sm:$0xff]
    %v1819 = vld [vmem:[#allocation8 + $0x414] sm:$0xff]
    %v1820 = vld [vmem:[#allocation8 + $0x41c] sm:$0xff]
    %v1821 = vld [vmem:[#allocation8 + $0x424] sm:$0xf]
    %v1822 = vld [vmem:[#allocation8 + $0x428] sm:$0xff]
    %v1823 = vld [vmem:[#allocation8 + $0x430] sm:$0xff]
    %v1824 = vld [vmem:[#allocation8 + $0x438] sm:$0xff]
    %v1825 = vld [vmem:[#allocation8 + $0x440] sm:$0xf]
    %v1826 = vld [vmem:[#allocation8 + $0x444] sm:$0xff]
    %v1827 = vld [vmem:[#allocation8 + $0x44c] sm:$0xff]
    %v1828 = vld [vmem:[#allocation8 + $0x454] sm:$0xff]
    %v1829 = vld [vmem:[#allocation8 + $0x45c] sm:$0xf]
    %v1830 = vld [vmem:[#allocation8 + $0x460] sm:$0xff]
    %v1831 = vld [vmem:[#allocation8 + $0x468] sm:$0xff]
    %v1832 = vld [vmem:[#allocation8 + $0x470] sm:$0xff]
    %v1833 = vld [vmem:[#allocation8 + $0x478] sm:$0xf]
    %v1834 = vld [vmem:[#allocation8 + $0x47c] sm:$0xff]
    %v1835 = vld [vmem:[#allocation8 + $0x484] sm:$0xff]
    %v1836 = vld [vmem:[#allocation8 + $0x48c] sm:$0xff]
    %v1837 = vld [vmem:[#allocation8 + $0x494] sm:$0xf]
    %v1838 = vld [vmem:[#allocation8 + $0x498] sm:$0xff]
    %v1839 = vld [vmem:[#allocation8 + $0x4a0] sm:$0xff]
    %v1840 = vld [vmem:[#allocation8 + $0x4a8] sm:$0xff]
    %v1841 = vld [vmem:[#allocation8 + $0x4b0] sm:$0xf]
    %v1842 = vld [vmem:[#allocation8 + $0x4b4] sm:$0xff]
    %v1843 = vld [vmem:[#allocation8 + $0x4bc] sm:$0xff]
    %v1844 = vld [vmem:[#allocation8 + $0x4c4] sm:$0xff]
    %v1845 = vld [vmem:[#allocation8 + $0x4cc] sm:$0xf]
    %v1846 = vld [vmem:[#allocation8 + $0x4d0] sm:$0xff]
    %v1847 = vld [vmem:[#allocation8 + $0x4d8] sm:$0xff]
    %v1848 = vld [vmem:[#allocation8 + $0x4e0] sm:$0xff]
    %v1849 = vld [vmem:[#allocation8 + $0x4e8] sm:$0xf]
    %v1850 = vld [vmem:[#allocation8 + $0x4ec] sm:$0xff]
    %v1851 = vld [vmem:[#allocation8 + $0x4f4] sm:$0xff]
    %v1852 = vld [vmem:[#allocation8 + $0x4fc] sm:$0xff]
    %v1853 = vld [vmem:[#allocation8 + $0x504] sm:$0xf]
    %v1854 = vld [vmem:[#allocation8 + $0x508] sm:$0xff]
    %v1855 = vld [vmem:[#allocation8 + $0x510] sm:$0xff]
    %v1856 = vld [vmem:[#allocation8 + $0x518] sm:$0xff]
    %v1857 = vld [vmem:[#allocation8 + $0x520] sm:$0xf]
    %v1858 = vld [vmem:[#allocation8 + $0x524] sm:$0xff]
    %v1859 = vld [vmem:[#allocation8 + $0x52c] sm:$0xff]
    %v1860 = vld [vmem:[#allocation8 + $0x534] sm:$0xff]
    %v1861 = vld [vmem:[#allocation8 + $0x53c] sm:$0xf]
    %v1862 = vld [vmem:[#allocation8 + $0x540] sm:$0xff]
    %v1863 = vld [vmem:[#allocation8 + $0x548] sm:$0xff]
    %v1864 = vld [vmem:[#allocation8 + $0x550] sm:$0xff]
    %v1865 = vld [vmem:[#allocation8 + $0x558] sm:$0xf]
    %v1866 = vld [vmem:[#allocation8 + $0x55c] sm:$0xff]
    %v1867 = vld [vmem:[#allocation8 + $0x564] sm:$0xff]
    %v1868 = vld [vmem:[#allocation8 + $0x56c] sm:$0xff]
    %v1869 = vld [vmem:[#allocation8 + $0x574] sm:$0xf]
    %v1870 = vld [vmem:[#allocation8 + $0x578] sm:$0xff]
    %v1871 = vld [vmem:[#allocation8 + $0x580] sm:$0xff]
    %v1872 = vld [vmem:[#allocation8 + $0x588] sm:$0xff]
    %v1873 = vld [vmem:[#allocation8 + $0x590] sm:$0xf]
    %v1874 = vld [vmem:[#allocation8 + $0x594] sm:$0xff]
    %v1875 = vld [vmem:[#allocation8 + $0x59c] sm:$0xff]
    %v1876 = vld [vmem:[#allocation8 + $0x5a4] sm:$0xff]
    %v1877 = vld [vmem:[#allocation8 + $0x5ac] sm:$0xf]
    %v1878 = vld [vmem:[#allocation8 + $0x5b0] sm:$0xff]
    %v1879 = vld [vmem:[#allocation8 + $0x5b8] sm:$0xff]
    %v1880 = vld [vmem:[#allocation8 + $0x5c0] sm:$0xff]
    %v1881 = vld [vmem:[#allocation8 + $0x5c8] sm:$0xf]
    %v1882 = vld [vmem:[#allocation8 + $0x5cc] sm:$0xff]
    %v1883 = vld [vmem:[#allocation8 + $0x5d4] sm:$0xff]
    %v1884 = vld [vmem:[#allocation8 + $0x5dc] sm:$0xff]
    %v1885 = vld [vmem:[#allocation8 + $0x5e4] sm:$0xf]
    %v1886 = vld [vmem:[#allocation8 + $0x5e8] sm:$0xff]
    %v1887 = vld [vmem:[#allocation8 + $0x5f0] sm:$0xff]
    %v1888 = vld [vmem:[#allocation8 + $0x5f8] sm:$0xff]
    %v1889 = vld [vmem:[#allocation8 + $0x600] sm:$0xf]
    %v1890 = vld [vmem:[#allocation8 + $0x604] sm:$0xff]
    %v1891 = vld [vmem:[#allocation8 + $0x60c] sm:$0xff]
    %v1892 = vld [vmem:[#allocation8 + $0x614] sm:$0xff]
    %v1893 = vld [vmem:[#allocation8 + $0x61c] sm:$0xf]
    %v1894 = vld [vmem:[#allocation8 + $0x620] sm:$0xff]
    %v1895 = vld [vmem:[#allocation8 + $0x628] sm:$0xff]
    %v1896 = vld [vmem:[#allocation8 + $0x630] sm:$0xff]
    %v1897 = vld [vmem:[#allocation8 + $0x638] sm:$0xf]
    %v1898 = vld [vmem:[#allocation8 + $0x63c] sm:$0xff]
    %v1899 = vld [vmem:[#allocation8 + $0x644] sm:$0xff]
    %v1900 = vld [vmem:[#allocation8 + $0x64c] sm:$0xff]
    %v1901 = vld [vmem:[#allocation8 + $0x654] sm:$0xf]
    %v1902 = vld [vmem:[#allocation8 + $0x658] sm:$0xff]
    %v1903 = vld [vmem:[#allocation8 + $0x660] sm:$0xff]
    %v1904 = vld [vmem:[#allocation8 + $0x668] sm:$0xff]
    %v1905 = vld [vmem:[#allocation8 + $0x670] sm:$0xf]
    %v1906 = vld [vmem:[#allocation8 + $0x674] sm:$0xff]
    %v1907 = vld [vmem:[#allocation8 + $0x67c] sm:$0xff]
    %v1908 = vld [vmem:[#allocation8 + $0x684] sm:$0xff]
    %v1909 = vld [vmem:[#allocation8 + $0x68c] sm:$0xf]
    %v1910 = vld [vmem:[#allocation8 + $0x690] sm:$0xff]
    %v1911 = vld [vmem:[#allocation8 + $0x698] sm:$0xff]
    %v1912 = vld [vmem:[#allocation8 + $0x6a0] sm:$0xff]
    %v1913 = vld [vmem:[#allocation8 + $0x6a8] sm:$0xf]
    %v1914 = vld [vmem:[#allocation8 + $0x6ac] sm:$0xff]
    %v1915 = vld [vmem:[#allocation8 + $0x6b4] sm:$0xff]
    %v1916 = vld [vmem:[#allocation8 + $0x6bc] sm:$0xff]
    %v1917 = vld [vmem:[#allocation8 + $0x6c4] sm:$0xf]
    %v1918 = vld [vmem:[#allocation8 + $0x6c8] sm:$0xff]
    %v1919 = vld [vmem:[#allocation8 + $0x6d0] sm:$0xff]
    %v1920 = vld [vmem:[#allocation8 + $0x6d8] sm:$0xff]
    %v1921 = vld [vmem:[#allocation8 + $0x6e0] sm:$0xf]
    %v1922 = vld [vmem:[#allocation8 + $0x6e4] sm:$0xff]
    %v1923 = vld [vmem:[#allocation8 + $0x6ec] sm:$0xff]
    %v1924 = vld [vmem:[#allocation8 + $0x6f4] sm:$0xff]
    %v1925 = vld [vmem:[#allocation8 + $0x6fc] sm:$0xf]
    %v1926 = vld [vmem:[#allocation10] sm:$0xff]
    %v1928 = vperm.slane %v1926, 0
    %v1929 = vperm.slane %v1926, 1
    %v1930 = vperm.slane %v1926, 2
    %v1931 = vperm.slane %v1926, 3
    %v1932 = vperm.slane %v1926, 4
    %v1933 = vperm.slane %v1926, 5
    %v1934 = vperm.slane %v1926, 6
    %v2198 = vunpack.c.l.b16 %v1670
    %v2199 = vunpack.c.h.b16 %v1670
    %v2200 = vunpack.c.l.b16 %v1671
    %v2201 = vunpack.c.h.b16 %v1671
    %v2202 = vunpack.c.l.b16 %v1672
    %v2203 = vunpack.c.h.b16 %v1672
    %v2204 = vunpack.c.l.b16 %v1673
    %v2205 = vunpack.c.l.b16 %v1674
    %v2206 = vunpack.c.h.b16 %v1674
    %v2207 = vunpack.c.l.b16 %v1675
    %v2208 = vunpack.c.h.b16 %v1675
    %v2209 = vunpack.c.l.b16 %v1676
    %v2210 = vunpack.c.h.b16 %v1676
    %v2211 = vunpack.c.l.b16 %v1677
    %v2212 = vunpack.c.l.b16 %v1678
    %v2213 = vunpack.c.h.b16 %v1678
    %v2214 = vunpack.c.l.b16 %v1679
    %v2215 = vunpack.c.h.b16 %v1679
    %v2216 = vunpack.c.l.b16 %v1680
    %v2217 = vunpack.c.h.b16 %v1680
    %v2218 = vunpack.c.l.b16 %v1681
    %v2219 = vunpack.c.l.b16 %v1682
    %v2220 = vunpack.c.h.b16 %v1682
    %v2221 = vunpack.c.l.b16 %v1683
    %v2222 = vunpack.c.h.b16 %v1683
    %v2223 = vunpack.c.l.b16 %v1684
    %v2224 = vunpack.c.h.b16 %v1684
    %v2225 = vunpack.c.l.b16 %v1685
    %v2226 = vunpack.c.l.b16 %v1686
    %v2227 = vunpack.c.h.b16 %v1686
    %v2228 = vunpack.c.l.b16 %v1687
    %v2229 = vunpack.c.h.b16 %v1687
    %v2230 = vunpack.c.l.b16 %v1688
    %v2231 = vunpack.c.h.b16 %v1688
    %v2232 = vunpack.c.l.b16 %v1689
    %v2233 = vunpack.c.l.b16 %v1690
    %v2234 = vunpack.c.h.b16 %v1690
    %v2235 = vunpack.c.l.b16 %v1691
    %v2236 = vunpack.c.h.b16 %v1691
    %v2237 = vunpack.c.l.b16 %v1692
    %v2238 = vunpack.c.h.b16 %v1692
    %v2239 = vunpack.c.l.b16 %v1693
    %v2240 = vunpack.c.l.b16 %v1694
    %v2241 = vunpack.c.h.b16 %v1694
    %v2242 = vunpack.c.l.b16 %v1695
    %v2243 = vunpack.c.h.b16 %v1695
    %v2244 = vunpack.c.l.b16 %v1696
    %v2245 = vunpack.c.h.b16 %v1696
    %v2246 = vunpack.c.l.b16 %v1697
    %v2247 = vunpack.c.l.b16 %v1698
    %v2248 = vunpack.c.h.b16 %v1698
    %v2249 = vunpack.c.l.b16 %v1699
    %v2250 = vunpack.c.h.b16 %v1699
    %v2251 = vunpack.c.l.b16 %v1700
    %v2252 = vunpack.c.h.b16 %v1700
    %v2253 = vunpack.c.l.b16 %v1701
    %v2254 = vunpack.c.l.b16 %v1702
    %v2255 = vunpack.c.h.b16 %v1702
    %v2256 = vunpack.c.l.b16 %v1703
    %v2257 = vunpack.c.h.b16 %v1703
    %v2258 = vunpack.c.l.b16 %v1704
    %v2259 = vunpack.c.h.b16 %v1704
    %v2260 = vunpack.c.l.b16 %v1705
    %v2261 = vunpack.c.l.b16 %v1706
    %v2262 = vunpack.c.h.b16 %v1706
    %v2263 = vunpack.c.l.b16 %v1707
    %v2264 = vunpack.c.h.b16 %v1707
    %v2265 = vunpack.c.l.b16 %v1708
    %v2266 = vunpack.c.h.b16 %v1708
    %v2267 = vunpack.c.l.b16 %v1709
    %v2268 = vunpack.c.l.b16 %v1710
    %v2269 = vunpack.c.h.b16 %v1710
    %v2270 = vunpack.c.l.b16 %v1711
    %v2271 = vunpack.c.h.b16 %v1711
    %v2272 = vunpack.c.l.b16 %v1712
    %v2273 = vunpack.c.h.b16 %v1712
    %v2274 = vunpack.c.l.b16 %v1713
    %v2275 = vunpack.c.l.b16 %v1714
    %v2276 = vunpack.c.h.b16 %v1714
    %v2277 = vunpack.c.l.b16 %v1715
    %v2278 = vunpack.c.h.b16 %v1715
    %v2279 = vunpack.c.l.b16 %v1716
    %v2280 = vunpack.c.h.b16 %v1716
    %v2281 = vunpack.c.l.b16 %v1717
    %v2282 = vunpack.c.l.b16 %v1718
    %v2283 = vunpack.c.h.b16 %v1718
    %v2284 = vunpack.c.l.b16 %v1719
    %v2285 = vunpack.c.h.b16 %v1719
    %v2286 = vunpack.c.l.b16 %v1720
    %v2287 = vunpack.c.h.b16 %v1720
    %v2288 = vunpack.c.l.b16 %v1721
    %v2289 = vunpack.c.l.b16 %v1722
    %v2290 = vunpack.c.h.b16 %v1722
    %v2291 = vunpack.c.l.b16 %v1723
    %v2292 = vunpack.c.h.b16 %v1723
    %v2293 = vunpack.c.l.b16 %v1724
    %v2294 = vunpack.c.h.b16 %v1724
    %v2295 = vunpack.c.l.b16 %v1725
    %v2296 = vunpack.c.l.b16 %v1726
    %v2297 = vunpack.c.h.b16 %v1726
    %v2298 = vunpack.c.l.b16 %v1727
    %v2299 = vunpack.c.h.b16 %v1727
    %v2300 = vunpack.c.l.b16 %v1728
    %v2301 = vunpack.c.h.b16 %v1728
    %v2302 = vunpack.c.l.b16 %v1729
    %v2303 = vunpack.c.l.b16 %v1730
    %v2304 = vunpack.c.h.b16 %v1730
    %v2305 = vunpack.c.l.b16 %v1731
    %v2306 = vunpack.c.h.b16 %v1731
    %v2307 = vunpack.c.l.b16 %v1732
    %v2308 = vunpack.c.h.b16 %v1732
    %v2309 = vunpack.c.l.b16 %v1733
    %v2310 = vunpack.c.l.b16 %v1734
    %v2311 = vunpack.c.h.b16 %v1734
    %v2312 = vunpack.c.l.b16 %v1735
    %v2313 = vunpack.c.h.b16 %v1735
    %v2314 = vunpack.c.l.b16 %v1736
    %v2315 = vunpack.c.h.b16 %v1736
    %v2316 = vunpack.c.l.b16 %v1737
    %v2317 = vunpack.c.l.b16 %v1738
    %v2318 = vunpack.c.h.b16 %v1738
    %v2319 = vunpack.c.l.b16 %v1739
    %v2320 = vunpack.c.h.b16 %v1739
    %v2321 = vunpack.c.l.b16 %v1740
    %v2322 = vunpack.c.h.b16 %v1740
    %v2323 = vunpack.c.l.b16 %v1741
    %v2324 = vunpack.c.l.b16 %v1742
    %v2325 = vunpack.c.h.b16 %v1742
    %v2326 = vunpack.c.l.b16 %v1743
    %v2327 = vunpack.c.h.b16 %v1743
    %v2328 = vunpack.c.l.b16 %v1744
    %v2329 = vunpack.c.h.b16 %v1744
    %v2330 = vunpack.c.l.b16 %v1745
    %v2331 = vunpack.c.l.b16 %v1746
    %v2332 = vunpack.c.h.b16 %v1746
    %v2333 = vunpack.c.l.b16 %v1747
    %v2334 = vunpack.c.h.b16 %v1747
    %v2335 = vunpack.c.l.b16 %v1748
    %v2336 = vunpack.c.h.b16 %v1748
    %v2337 = vunpack.c.l.b16 %v1749
    %v2338 = vunpack.c.l.b16 %v1750
    %v2339 = vunpack.c.h.b16 %v1750
    %v2340 = vunpack.c.l.b16 %v1751
    %v2341 = vunpack.c.h.b16 %v1751
    %v2342 = vunpack.c.l.b16 %v1752
    %v2343 = vunpack.c.h.b16 %v1752
    %v2344 = vunpack.c.l.b16 %v1753
    %v2345 = vunpack.c.l.b16 %v1754
    %v2346 = vunpack.c.h.b16 %v1754
    %v2347 = vunpack.c.l.b16 %v1755
    %v2348 = vunpack.c.h.b16 %v1755
    %v2349 = vunpack.c.l.b16 %v1756
    %v2350 = vunpack.c.h.b16 %v1756
    %v2351 = vunpack.c.l.b16 %v1757
    %v2352 = vunpack.c.l.b16 %v1758
    %v2353 = vunpack.c.h.b16 %v1758
    %v2354 = vunpack.c.l.b16 %v1759
    %v2355 = vunpack.c.h.b16 %v1759
    %v2356 = vunpack.c.l.b16 %v1760
    %v2357 = vunpack.c.h.b16 %v1760
    %v2358 = vunpack.c.l.b16 %v1761
    %v2359 = vunpack.c.l.b16 %v1762
    %v2360 = vunpack.c.h.b16 %v1762
    %v2361 = vunpack.c.l.b16 %v1763
    %v2362 = vunpack.c.h.b16 %v1763
    %v2363 = vunpack.c.l.b16 %v1764
    %v2364 = vunpack.c.h.b16 %v1764
    %v2365 = vunpack.c.l.b16 %v1765
    %v2366 = vunpack.c.l.b16 %v1766
    %v2367 = vunpack.c.h.b16 %v1766
    %v2368 = vunpack.c.l.b16 %v1767
    %v2369 = vunpack.c.h.b16 %v1767
    %v2370 = vunpack.c.l.b16 %v1768
    %v2371 = vunpack.c.h.b16 %v1768
    %v2372 = vunpack.c.l.b16 %v1769
    %v2373 = vunpack.c.l.b16 %v1770
    %v2374 = vunpack.c.h.b16 %v1770
    %v2375 = vunpack.c.l.b16 %v1771
    %v2376 = vunpack.c.h.b16 %v1771
    %v2377 = vunpack.c.l.b16 %v1772
    %v2378 = vunpack.c.h.b16 %v1772
    %v2379 = vunpack.c.l.b16 %v1773
    %v2380 = vunpack.c.l.b16 %v1774
    %v2381 = vunpack.c.h.b16 %v1774
    %v2382 = vunpack.c.l.b16 %v1775
    %v2383 = vunpack.c.h.b16 %v1775
    %v2384 = vunpack.c.l.b16 %v1776
    %v2385 = vunpack.c.h.b16 %v1776
    %v2386 = vunpack.c.l.b16 %v1777
    %v2387 = vunpack.c.l.b16 %v1778
    %v2388 = vunpack.c.h.b16 %v1778
    %v2389 = vunpack.c.l.b16 %v1779
    %v2390 = vunpack.c.h.b16 %v1779
    %v2391 = vunpack.c.l.b16 %v1780
    %v2392 = vunpack.c.h.b16 %v1780
    %v2393 = vunpack.c.l.b16 %v1781
    %v2394 = vunpack.c.l.b16 %v1782
    %v2395 = vunpack.c.h.b16 %v1782
    %v2396 = vunpack.c.l.b16 %v1783
    %v2397 = vunpack.c.h.b16 %v1783
    %v2398 = vunpack.c.l.b16 %v1784
    %v2399 = vunpack.c.h.b16 %v1784
    %v2400 = vunpack.c.l.b16 %v1785
    %v2401 = vunpack.c.l.b16 %v1786
    %v2402 = vunpack.c.h.b16 %v1786
    %v2403 = vunpack.c.l.b16 %v1787
    %v2404 = vunpack.c.h.b16 %v1787
    %v2405 = vunpack.c.l.b16 %v1788
    %v2406 = vunpack.c.h.b16 %v1788
    %v2407 = vunpack.c.l.b16 %v1789
    %v2408 = vunpack.c.l.b16 %v1790
    %v2409 = vunpack.c.h.b16 %v1790
    %v2410 = vunpack.c.l.b16 %v1791
    %v2411 = vunpack.c.h.b16 %v1791
    %v2412 = vunpack.c.l.b16 %v1792
    %v2413 = vunpack.c.h.b16 %v1792
    %v2414 = vunpack.c.l.b16 %v1793
    %v2415 = vunpack.c.l.b16 %v1794
    %v2416 = vunpack.c.h.b16 %v1794
    %v2417 = vunpack.c.l.b16 %v1795
    %v2418 = vunpack.c.h.b16 %v1795
    %v2419 = vunpack.c.l.b16 %v1796
    %v2420 = vunpack.c.h.b16 %v1796
    %v2421 = vunpack.c.l.b16 %v1797
    %v2422 = vunpack.c.l.b16 %v1798
    %v2423 = vunpack.c.h.b16 %v1798
    %v2424 = vunpack.c.l.b16 %v1799
    %v2425 = vunpack.c.h.b16 %v1799
    %v2426 = vunpack.c.l.b16 %v1800
    %v2427 = vunpack.c.h.b16 %v1800
    %v2428 = vunpack.c.l.b16 %v1801
    %v2429 = vunpack.c.l.b16 %v1802
    %v2430 = vunpack.c.h.b16 %v1802
    %v2431 = vunpack.c.l.b16 %v1803
    %v2432 = vunpack.c.h.b16 %v1803
    %v2433 = vunpack.c.l.b16 %v1804
    %v2434 = vunpack.c.h.b16 %v1804
    %v2435 = vunpack.c.l.b16 %v1805
    %v2436 = vunpack.c.l.b16 %v1806
    %v2437 = vunpack.c.h.b16 %v1806
    %v2438 = vunpack.c.l.b16 %v1807
    %v2439 = vunpack.c.h.b16 %v1807
    %v2440 = vunpack.c.l.b16 %v1808
    %v2441 = vunpack.c.h.b16 %v1808
    %v2442 = vunpack.c.l.b16 %v1809
    %v2443 = vunpack.c.l.b16 %v1810
    %v2444 = vunpack.c.h.b16 %v1810
    %v2445 = vunpack.c.l.b16 %v1811
    %v2446 = vunpack.c.h.b16 %v1811
    %v2447 = vunpack.c.l.b16 %v1812
    %v2448 = vunpack.c.h.b16 %v1812
    %v2449 = vunpack.c.l.b16 %v1813
    %v2450 = vunpack.c.l.b16 %v1814
    %v2451 = vunpack.c.h.b16 %v1814
    %v2452 = vunpack.c.l.b16 %v1815
    %v2453 = vunpack.c.h.b16 %v1815
    %v2454 = vunpack.c.l.b16 %v1816
    %v2455 = vunpack.c.h.b16 %v1816
    %v2456 = vunpack.c.l.b16 %v1817
    %v2457 = vunpack.c.l.b16 %v1818
    %v2458 = vunpack.c.h.b16 %v1818
    %v2459 = vunpack.c.l.b16 %v1819
    %v2460 = vunpack.c.h.b16 %v1819
    %v2461 = vunpack.c.l.b16 %v1820
    %v2462 = vunpack.c.h.b16 %v1820
    %v2463 = vunpack.c.l.b16 %v1821
    %v2464 = vunpack.c.l.b16 %v1822
    %v2465 = vunpack.c.h.b16 %v1822
    %v2466 = vunpack.c.l.b16 %v1823
    %v2467 = vunpack.c.h.b16 %v1823
    %v2468 = vunpack.c.l.b16 %v1824
    %v2469 = vunpack.c.h.b16 %v1824
    %v2470 = vunpack.c.l.b16 %v1825
    %v2471 = vunpack.c.l.b16 %v1826
    %v2472 = vunpack.c.h.b16 %v1826
    %v2473 = vunpack.c.l.b16 %v1827
    %v2474 = vunpack.c.h.b16 %v1827
    %v2475 = vunpack.c.l.b16 %v1828
    %v2476 = vunpack.c.h.b16 %v1828
    %v2477 = vunpack.c.l.b16 %v1829
    %v2478 = vunpack.c.l.b16 %v1830
    %v2479 = vunpack.c.h.b16 %v1830
    %v2480 = vunpack.c.l.b16 %v1831
    %v2481 = vunpack.c.h.b16 %v1831
    %v2482 = vunpack.c.l.b16 %v1832
    %v2483 = vunpack.c.h.b16 %v1832
    %v2484 = vunpack.c.l.b16 %v1833
    %v2485 = vunpack.c.l.b16 %v1834
    %v2486 = vunpack.c.h.b16 %v1834
    %v2487 = vunpack.c.l.b16 %v1835
    %v2488 = vunpack.c.h.b16 %v1835
    %v2489 = vunpack.c.l.b16 %v1836
    %v2490 = vunpack.c.h.b16 %v1836
    %v2491 = vunpack.c.l.b16 %v1837
    %v2492 = vunpack.c.l.b16 %v1838
    %v2493 = vunpack.c.h.b16 %v1838
    %v2494 = vunpack.c.l.b16 %v1839
    %v2495 = vunpack.c.h.b16 %v1839
    %v2496 = vunpack.c.l.b16 %v1840
    %v2497 = vunpack.c.h.b16 %v1840
    %v2498 = vunpack.c.l.b16 %v1841
    %v2499 = vunpack.c.l.b16 %v1842
    %v2500 = vunpack.c.h.b16 %v1842
    %v2501 = vunpack.c.l.b16 %v1843
    %v2502 = vunpack.c.h.b16 %v1843
    %v2503 = vunpack.c.l.b16 %v1844
    %v2504 = vunpack.c.h.b16 %v1844
    %v2505 = vunpack.c.l.b16 %v1845
    %v2506 = vunpack.c.l.b16 %v1846
    %v2507 = vunpack.c.h.b16 %v1846
    %v2508 = vunpack.c.l.b16 %v1847
    %v2509 = vunpack.c.h.b16 %v1847
    %v2510 = vunpack.c.l.b16 %v1848
    %v2511 = vunpack.c.h.b16 %v1848
    %v2512 = vunpack.c.l.b16 %v1849
    %v2513 = vunpack.c.l.b16 %v1850
    %v2514 = vunpack.c.h.b16 %v1850
    %v2515 = vunpack.c.l.b16 %v1851
    %v2516 = vunpack.c.h.b16 %v1851
    %v2517 = vunpack.c.l.b16 %v1852
    %v2518 = vunpack.c.h.b16 %v1852
    %v2519 = vunpack.c.l.b16 %v1853
    %v2520 = vunpack.c.l.b16 %v1854
    %v2521 = vunpack.c.h.b16 %v1854
    %v2522 = vunpack.c.l.b16 %v1855
    %v2523 = vunpack.c.h.b16 %v1855
    %v2524 = vunpack.c.l.b16 %v1856
    %v2525 = vunpack.c.h.b16 %v1856
    %v2526 = vunpack.c.l.b16 %v1857
    %v2527 = vunpack.c.l.b16 %v1858
    %v2528 = vunpack.c.h.b16 %v1858
    %v2529 = vunpack.c.l.b16 %v1859
    %v2530 = vunpack.c.h.b16 %v1859
    %v2531 = vunpack.c.l.b16 %v1860
    %v2532 = vunpack.c.h.b16 %v1860
    %v2533 = vunpack.c.l.b16 %v1861
    %v2534 = vunpack.c.l.b16 %v1862
    %v2535 = vunpack.c.h.b16 %v1862
    %v2536 = vunpack.c.l.b16 %v1863
    %v2537 = vunpack.c.h.b16 %v1863
    %v2538 = vunpack.c.l.b16 %v1864
    %v2539 = vunpack.c.h.b16 %v1864
    %v2540 = vunpack.c.l.b16 %v1865
    %v2541 = vunpack.c.l.b16 %v1866
    %v2542 = vunpack.c.h.b16 %v1866
    %v2543 = vunpack.c.l.b16 %v1867
    %v2544 = vunpack.c.h.b16 %v1867
    %v2545 = vunpack.c.l.b16 %v1868
    %v2546 = vunpack.c.h.b16 %v1868
    %v2547 = vunpack.c.l.b16 %v1869
    %v2548 = vunpack.c.l.b16 %v1870
    %v2549 = vunpack.c.h.b16 %v1870
    %v2550 = vunpack.c.l.b16 %v1871
    %v2551 = vunpack.c.h.b16 %v1871
    %v2552 = vunpack.c.l.b16 %v1872
    %v2553 = vunpack.c.h.b16 %v1872
    %v2554 = vunpack.c.l.b16 %v1873
    %v2555 = vunpack.c.l.b16 %v1874
    %v2556 = vunpack.c.h.b16 %v1874
    %v2557 = vunpack.c.l.b16 %v1875
    %v2558 = vunpack.c.h.b16 %v1875
    %v2559 = vunpack.c.l.b16 %v1876
    %v2560 = vunpack.c.h.b16 %v1876
    %v2561 = vunpack.c.l.b16 %v1877
    %v2562 = vunpack.c.l.b16 %v1878
    %v2563 = vunpack.c.h.b16 %v1878
    %v2564 = vunpack.c.l.b16 %v1879
    %v2565 = vunpack.c.h.b16 %v1879
    %v2566 = vunpack.c.l.b16 %v1880
    %v2567 = vunpack.c.h.b16 %v1880
    %v2568 = vunpack.c.l.b16 %v1881
    %v2569 = vunpack.c.l.b16 %v1882
    %v2570 = vunpack.c.h.b16 %v1882
    %v2571 = vunpack.c.l.b16 %v1883
    %v2572 = vunpack.c.h.b16 %v1883
    %v2573 = vunpack.c.l.b16 %v1884
    %v2574 = vunpack.c.h.b16 %v1884
    %v2575 = vunpack.c.l.b16 %v1885
    %v2576 = vunpack.c.l.b16 %v1886
    %v2577 = vunpack.c.h.b16 %v1886
    %v2578 = vunpack.c.l.b16 %v1887
    %v2579 = vunpack.c.h.b16 %v1887
    %v2580 = vunpack.c.l.b16 %v1888
    %v2581 = vunpack.c.h.b16 %v1888
    %v2582 = vunpack.c.l.b16 %v1889
    %v2583 = vunpack.c.l.b16 %v1890
    %v2584 = vunpack.c.h.b16 %v1890
    %v2585 = vunpack.c.l.b16 %v1891
    %v2586 = vunpack.c.h.b16 %v1891
    %v2587 = vunpack.c.l.b16 %v1892
    %v2588 = vunpack.c.h.b16 %v1892
    %v2589 = vunpack.c.l.b16 %v1893
    %v2590 = vunpack.c.l.b16 %v1894
    %v2591 = vunpack.c.h.b16 %v1894
    %v2592 = vunpack.c.l.b16 %v1895
    %v2593 = vunpack.c.h.b16 %v1895
    %v2594 = vunpack.c.l.b16 %v1896
    %v2595 = vunpack.c.h.b16 %v1896
    %v2596 = vunpack.c.l.b16 %v1897
    %v2597 = vunpack.c.l.b16 %v1898
    %v2598 = vunpack.c.h.b16 %v1898
    %v2599 = vunpack.c.l.b16 %v1899
    %v2600 = vunpack.c.h.b16 %v1899
    %v2601 = vunpack.c.l.b16 %v1900
    %v2602 = vunpack.c.h.b16 %v1900
    %v2603 = vunpack.c.l.b16 %v1901
    %v2604 = vunpack.c.l.b16 %v1902
    %v2605 = vunpack.c.h.b16 %v1902
    %v2606 = vunpack.c.l.b16 %v1903
    %v2607 = vunpack.c.h.b16 %v1903
    %v2608 = vunpack.c.l.b16 %v1904
    %v2609 = vunpack.c.h.b16 %v1904
    %v2610 = vunpack.c.l.b16 %v1905
    %v2611 = vunpack.c.l.b16 %v1906
    %v2612 = vunpack.c.h.b16 %v1906
    %v2613 = vunpack.c.l.b16 %v1907
    %v2614 = vunpack.c.h.b16 %v1907
    %v2615 = vunpack.c.l.b16 %v1908
    %v2616 = vunpack.c.h.b16 %v1908
    %v2617 = vunpack.c.l.b16 %v1909
    %v2618 = vunpack.c.l.b16 %v1910
    %v2619 = vunpack.c.h.b16 %v1910
    %v2620 = vunpack.c.l.b16 %v1911
    %v2621 = vunpack.c.h.b16 %v1911
    %v2622 = vunpack.c.l.b16 %v1912
    %v2623 = vunpack.c.h.b16 %v1912
    %v2624 = vunpack.c.l.b16 %v1913
    %v2625 = vunpack.c.l.b16 %v1914
    %v2626 = vunpack.c.h.b16 %v1914
    %v2627 = vunpack.c.l.b16 %v1915
    %v2628 = vunpack.c.h.b16 %v1915
    %v2629 = vunpack.c.l.b16 %v1916
    %v2630 = vunpack.c.h.b16 %v1916
    %v2631 = vunpack.c.l.b16 %v1917
    %v2632 = vunpack.c.l.b16 %v1918
    %v2633 = vunpack.c.h.b16 %v1918
    %v2634 = vunpack.c.l.b16 %v1919
    %v2635 = vunpack.c.h.b16 %v1919
    %v2636 = vunpack.c.l.b16 %v1920
    %v2637 = vunpack.c.h.b16 %v1920
    %v2638 = vunpack.c.l.b16 %v1921
    %v2639 = vunpack.c.l.b16 %v1922
    %v2640 = vunpack.c.h.b16 %v1922
    %v2641 = vunpack.c.l.b16 %v1923
    %v2642 = vunpack.c.h.b16 %v1923
    %v2643 = vunpack.c.l.b16 %v1924
    %v2644 = vunpack.c.h.b16 %v1924
    %v2645 = vunpack.c.l.b16 %v1925
    %v2646 = vpack.c.b16 %v2205, %v2198
    %v2647 = vpack.c.b16 %v2206, %v2199
    %v2648 = vpack.c.b16 %v2207, %v2200
    %v2649 = vpack.c.b16 %v2208, %v2201
    %v2650 = vpack.c.b16 %v2209, %v2202
    %v2651 = vpack.c.b16 %v2210, %v2203
    %v2652 = vpack.c.b16 %v2211, %v2204
    %v2653 = vpack.c.b16 %v2219, %v2212
    %v2654 = vpack.c.b16 %v2220, %v2213
    %v2655 = vpack.c.b16 %v2221, %v2214
    %v2656 = vpack.c.b16 %v2222, %v2215
    %v2657 = vpack.c.b16 %v2223, %v2216
    %v2658 = vpack.c.b16 %v2224, %v2217
    %v2659 = vpack.c.b16 %v2225, %v2218
    %v2660 = vpack.c.b16 %v2233, %v2226
    %v2661 = vpack.c.b16 %v2234, %v2227
    %v2662 = vpack.c.b16 %v2235, %v2228
    %v2663 = vpack.c.b16 %v2236, %v2229
    %v2664 = vpack.c.b16 %v2237, %v2230
    %v2665 = vpack.c.b16 %v2238, %v2231
    %v2666 = vpack.c.b16 %v2239, %v2232
    %v2667 = vpack.c.b16 %v2247, %v2240
    %v2668 = vpack.c.b16 %v2248, %v2241
    %v2669 = vpack.c.b16 %v2249, %v2242
    %v2670 = vpack.c.b16 %v2250, %v2243
    %v2671 = vpack.c.b16 %v2251, %v2244
    %v2672 = vpack.c.b16 %v2252, %v2245
    %v2673 = vpack.c.b16 %v2253, %v2246
    %v2674 = vpack.c.b16 %v2261, %v2254
    %v2675 = vpack.c.b16 %v2262, %v2255
    %v2676 = vpack.c.b16 %v2263, %v2256
    %v2677 = vpack.c.b16 %v2264, %v2257
    %v2678 = vpack.c.b16 %v2265, %v2258
    %v2679 = vpack.c.b16 %v2266, %v2259
    %v2680 = vpack.c.b16 %v2267, %v2260
    %v2681 = vpack.c.b16 %v2275, %v2268
    %v2682 = vpack.c.b16 %v2276, %v2269
    %v2683 = vpack.c.b16 %v2277, %v2270
    %v2684 = vpack.c.b16 %v2278, %v2271
    %v2685 = vpack.c.b16 %v2279, %v2272
    %v2686 = vpack.c.b16 %v2280, %v2273
    %v2687 = vpack.c.b16 %v2281, %v2274
    %v2688 = vpack.c.b16 %v2289, %v2282
    %v2689 = vpack.c.b16 %v2290, %v2283
    %v2690 = vpack.c.b16 %v2291, %v2284
    %v2691 = vpack.c.b16 %v2292, %v2285
    %v2692 = vpack.c.b16 %v2293, %v2286
    %v2693 = vpack.c.b16 %v2294, %v2287
    %v2694 = vpack.c.b16 %v2295, %v2288
    %v2695 = vpack.c.b16 %v2303, %v2296
    %v2696 = vpack.c.b16 %v2304, %v2297
    %v2697 = vpack.c.b16 %v2305, %v2298
    %v2698 = vpack.c.b16 %v2306, %v2299
    %v2699 = vpack.c.b16 %v2307, %v2300
    %v2700 = vpack.c.b16 %v2308, %v2301
    %v2701 = vpack.c.b16 %v2309, %v2302
    %v2702 = vpack.c.b16 %v2317, %v2310
    %v2703 = vpack.c.b16 %v2318, %v2311
    %v2704 = vpack.c.b16 %v2319, %v2312
    %v2705 = vpack.c.b16 %v2320, %v2313
    %v2706 = vpack.c.b16 %v2321, %v2314
    %v2707 = vpack.c.b16 %v2322, %v2315
    %v2708 = vpack.c.b16 %v2323, %v2316
    %v2709 = vpack.c.b16 %v2331, %v2324
    %v2710 = vpack.c.b16 %v2332, %v2325
    %v2711 = vpack.c.b16 %v2333, %v2326
    %v2712 = vpack.c.b16 %v2334, %v2327
    %v2713 = vpack.c.b16 %v2335, %v2328
    %v2714 = vpack.c.b16 %v2336, %v2329
    %v2715 = vpack.c.b16 %v2337, %v2330
    %v2716 = vpack.c.b16 %v2345, %v2338
    %v2717 = vpack.c.b16 %v2346, %v2339
    %v2718 = vpack.c.b16 %v2347, %v2340
    %v2719 = vpack.c.b16 %v2348, %v2341
    %v2720 = vpack.c.b16 %v2349, %v2342
    %v2721 = vpack.c.b16 %v2350, %v2343
    %v2722 = vpack.c.b16 %v2351, %v2344
    %v2723 = vpack.c.b16 %v2359, %v2352
    %v2724 = vpack.c.b16 %v2360, %v2353
    %v2725 = vpack.c.b16 %v2361, %v2354
    %v2726 = vpack.c.b16 %v2362, %v2355
    %v2727 = vpack.c.b16 %v2363, %v2356
    %v2728 = vpack.c.b16 %v2364, %v2357
    %v2729 = vpack.c.b16 %v2365, %v2358
    %v2730 = vpack.c.b16 %v2373, %v2366
    %v2731 = vpack.c.b16 %v2374, %v2367
    %v2732 = vpack.c.b16 %v2375, %v2368
    %v2733 = vpack.c.b16 %v2376, %v2369
    %v2734 = vpack.c.b16 %v2377, %v2370
    %v2735 = vpack.c.b16 %v2378, %v2371
    %v2736 = vpack.c.b16 %v2379, %v2372
    %v2737 = vpack.c.b16 %v2387, %v2380
    %v2738 = vpack.c.b16 %v2388, %v2381
    %v2739 = vpack.c.b16 %v2389, %v2382
    %v2740 = vpack.c.b16 %v2390, %v2383
    %v2741 = vpack.c.b16 %v2391, %v2384
    %v2742 = vpack.c.b16 %v2392, %v2385
    %v2743 = vpack.c.b16 %v2393, %v2386
    %v2744 = vpack.c.b16 %v2401, %v2394
    %v2745 = vpack.c.b16 %v2402, %v2395
    %v2746 = vpack.c.b16 %v2403, %v2396
    %v2747 = vpack.c.b16 %v2404, %v2397
    %v2748 = vpack.c.b16 %v2405, %v2398
    %v2749 = vpack.c.b16 %v2406, %v2399
    %v2750 = vpack.c.b16 %v2407, %v2400
    %v2751 = vpack.c.b16 %v2415, %v2408
    %v2752 = vpack.c.b16 %v2416, %v2409
    %v2753 = vpack.c.b16 %v2417, %v2410
    %v2754 = vpack.c.b16 %v2418, %v2411
    %v2755 = vpack.c.b16 %v2419, %v2412
    %v2756 = vpack.c.b16 %v2420, %v2413
    %v2757 = vpack.c.b16 %v2421, %v2414
    %v2758 = vpack.c.b16 %v2429, %v2422
    %v2759 = vpack.c.b16 %v2430, %v2423
    %v2760 = vpack.c.b16 %v2431, %v2424
    %v2761 = vpack.c.b16 %v2432, %v2425
    %v2762 = vpack.c.b16 %v2433, %v2426
    %v2763 = vpack.c.b16 %v2434, %v2427
    %v2764 = vpack.c.b16 %v2435, %v2428
    %v2765 = vpack.c.b16 %v2443, %v2436
    %v2766 = vpack.c.b16 %v2444, %v2437
    %v2767 = vpack.c.b16 %v2445, %v2438
    %v2768 = vpack.c.b16 %v2446, %v2439
    %v2769 = vpack.c.b16 %v2447, %v2440
    %v2770 = vpack.c.b16 %v2448, %v2441
    %v2771 = vpack.c.b16 %v2449, %v2442
    %v2772 = vpack.c.b16 %v2457, %v2450
    %v2773 = vpack.c.b16 %v2458, %v2451
    %v2774 = vpack.c.b16 %v2459, %v2452
    %v2775 = vpack.c.b16 %v2460, %v2453
    %v2776 = vpack.c.b16 %v2461, %v2454
    %v2777 = vpack.c.b16 %v2462, %v2455
    %v2778 = vpack.c.b16 %v2463, %v2456
    %v2779 = vpack.c.b16 %v2471, %v2464
    %v2780 = vpack.c.b16 %v2472, %v2465
    %v2781 = vpack.c.b16 %v2473, %v2466
    %v2782 = vpack.c.b16 %v2474, %v2467
    %v2783 = vpack.c.b16 %v2475, %v2468
    %v2784 = vpack.c.b16 %v2476, %v2469
    %v2785 = vpack.c.b16 %v2477, %v2470
    %v2786 = vpack.c.b16 %v2485, %v2478
    %v2787 = vpack.c.b16 %v2486, %v2479
    %v2788 = vpack.c.b16 %v2487, %v2480
    %v2789 = vpack.c.b16 %v2488, %v2481
    %v2790 = vpack.c.b16 %v2489, %v2482
    %v2791 = vpack.c.b16 %v2490, %v2483
    %v2792 = vpack.c.b16 %v2491, %v2484
    %v2793 = vpack.c.b16 %v2499, %v2492
    %v2794 = vpack.c.b16 %v2500, %v2493
    %v2795 = vpack.c.b16 %v2501, %v2494
    %v2796 = vpack.c.b16 %v2502, %v2495
    %v2797 = vpack.c.b16 %v2503, %v2496
    %v2798 = vpack.c.b16 %v2504, %v2497
    %v2799 = vpack.c.b16 %v2505, %v2498
    %v2800 = vpack.c.b16 %v2513, %v2506
    %v2801 = vpack.c.b16 %v2514, %v2507
    %v2802 = vpack.c.b16 %v2515, %v2508
    %v2803 = vpack.c.b16 %v2516, %v2509
    %v2804 = vpack.c.b16 %v2517, %v2510
    %v2805 = vpack.c.b16 %v2518, %v2511
    %v2806 = vpack.c.b16 %v2519, %v2512
    %v2807 = vpack.c.b16 %v2527, %v2520
    %v2808 = vpack.c.b16 %v2528, %v2521
    %v2809 = vpack.c.b16 %v2529, %v2522
    %v2810 = vpack.c.b16 %v2530, %v2523
    %v2811 = vpack.c.b16 %v2531, %v2524
    %v2812 = vpack.c.b16 %v2532, %v2525
    %v2813 = vpack.c.b16 %v2533, %v2526
    %v2814 = vpack.c.b16 %v2541, %v2534
    %v2815 = vpack.c.b16 %v2542, %v2535
    %v2816 = vpack.c.b16 %v2543, %v2536
    %v2817 = vpack.c.b16 %v2544, %v2537
    %v2818 = vpack.c.b16 %v2545, %v2538
    %v2819 = vpack.c.b16 %v2546, %v2539
    %v2820 = vpack.c.b16 %v2547, %v2540
    %v2821 = vpack.c.b16 %v2555, %v2548
    %v2822 = vpack.c.b16 %v2556, %v2549
    %v2823 = vpack.c.b16 %v2557, %v2550
    %v2824 = vpack.c.b16 %v2558, %v2551
    %v2825 = vpack.c.b16 %v2559, %v2552
    %v2826 = vpack.c.b16 %v2560, %v2553
    %v2827 = vpack.c.b16 %v2561, %v2554
    %v2828 = vpack.c.b16 %v2569, %v2562
    %v2829 = vpack.c.b16 %v2570, %v2563
    %v2830 = vpack.c.b16 %v2571, %v2564
    %v2831 = vpack.c.b16 %v2572, %v2565
    %v2832 = vpack.c.b16 %v2573, %v2566
    %v2833 = vpack.c.b16 %v2574, %v2567
    %v2834 = vpack.c.b16 %v2575, %v2568
    %v2835 = vpack.c.b16 %v2583, %v2576
    %v2836 = vpack.c.b16 %v2584, %v2577
    %v2837 = vpack.c.b16 %v2585, %v2578
    %v2838 = vpack.c.b16 %v2586, %v2579
    %v2839 = vpack.c.b16 %v2587, %v2580
    %v2840 = vpack.c.b16 %v2588, %v2581
    %v2841 = vpack.c.b16 %v2589, %v2582
    %v2842 = vpack.c.b16 %v2597, %v2590
    %v2843 = vpack.c.b16 %v2598, %v2591
    %v2844 = vpack.c.b16 %v2599, %v2592
    %v2845 = vpack.c.b16 %v2600, %v2593
    %v2846 = vpack.c.b16 %v2601, %v2594
    %v2847 = vpack.c.b16 %v2602, %v2595
    %v2848 = vpack.c.b16 %v2603, %v2596
    %v2849 = vpack.c.b16 %v2611, %v2604
    %v2850 = vpack.c.b16 %v2612, %v2605
    %v2851 = vpack.c.b16 %v2613, %v2606
    %v2852 = vpack.c.b16 %v2614, %v2607
    %v2853 = vpack.c.b16 %v2615, %v2608
    %v2854 = vpack.c.b16 %v2616, %v2609
    %v2855 = vpack.c.b16 %v2617, %v2610
    %v2856 = vpack.c.b16 %v2625, %v2618
    %v2857 = vpack.c.b16 %v2626, %v2619
    %v2858 = vpack.c.b16 %v2627, %v2620
    %v2859 = vpack.c.b16 %v2628, %v2621
    %v2860 = vpack.c.b16 %v2629, %v2622
    %v2861 = vpack.c.b16 %v2630, %v2623
    %v2862 = vpack.c.b16 %v2631, %v2624
    %v2863 = vpack.c.b16 %v2639, %v2632
    %v2864 = vpack.c.b16 %v2640, %v2633
    %v2865 = vpack.c.b16 %v2641, %v2634
    %v2866 = vpack.c.b16 %v2642, %v2635
    %v2867 = vpack.c.b16 %v2643, %v2636
    %v2868 = vpack.c.b16 %v2644, %v2637
    %v2869 = vpack.c.b16 %v2645, %v2638
    %3094 = vmatpush.bf16.msra.mxu0 %v2695
    %3095 = vmatpush.bf16.msra.mxu0 %v2688
    %3096 = vmatpush.bf16.msra.mxu0 %v2681
    %3097 = vmatpush.bf16.msra.mxu0 %v2674
    %3098 = vmatpush.bf16.msra.mxu0 %v2667
    %3099 = vmatpush.bf16.msra.mxu0 %v2660
    %3100 = vmatpush.bf16.msra.mxu0 %v2653
    %3101 = vmatpush.bf16.msra.mxu0 %v2646
    %3102 = vmatmul.bf16.gmra.mxu0 %v1666
    %v3103 = vpop.f32.mrf.mxu0
    %v3104 = vadd.f32 %v1928, %v3103
    %v3105 = vpop.f32.mrf.mxu0
    %3106 = vdwg.mxu0
    %3107 = vmatpush.bf16.msra.mxu0 %v2751
    %3108 = vmatpush.bf16.msra.mxu0 %v2744
    %3109 = vmatpush.bf16.msra.mxu0 %v2737
    %3110 = vmatpush.bf16.msra.mxu0 %v2730
    %3111 = vmatpush.bf16.msra.mxu0 %v2723
    %3112 = vmatpush.bf16.msra.mxu0 %v2716
    %3113 = vmatpush.bf16.msra.mxu0 %v2709
    %3114 = vmatpush.bf16.msra.mxu0 %v2702
    %3115 = vmatmul.bf16.gmra.mxu0 %v1667
    %v3116 = vpop.f32.mrf.mxu0
    %v3117 = vadd.f32 %v3104, %v3116
    %v3118 = vpop.f32.mrf.mxu0
    %3119 = vdwg.mxu0
    %3120 = vmatpush.bf16.msra.mxu0 %v2807
    %3121 = vmatpush.bf16.msra.mxu0 %v2800
    %3122 = vmatpush.bf16.msra.mxu0 %v2793
    %3123 = vmatpush.bf16.msra.mxu0 %v2786
    %3124 = vmatpush.bf16.msra.mxu0 %v2779
    %3125 = vmatpush.bf16.msra.mxu0 %v2772
    %3126 = vmatpush.bf16.msra.mxu0 %v2765
    %3127 = vmatpush.bf16.msra.mxu0 %v2758
    %3128 = vmatmul.bf16.gmra.mxu0 %v1668
    %v3129 = vpop.f32.mrf.mxu0
    %v3130 = vadd.f32 %v3117, %v3129
    %v3131 = vpop.f32.mrf.mxu0
    %3132 = vdwg.mxu0
    %3133 = vmatpush.bf16.msra.mxu0 %v2863
    %3134 = vmatpush.bf16.msra.mxu0 %v2856
    %3135 = vmatpush.bf16.msra.mxu0 %v2849
    %3136 = vmatpush.bf16.msra.mxu0 %v2842
    %3137 = vmatpush.bf16.msra.mxu0 %v2835
    %3138 = vmatpush.bf16.msra.mxu0 %v2828
    %3139 = vmatpush.bf16.msra.mxu0 %v2821
    %3140 = vmatpush.bf16.msra.mxu0 %v2814
    %3141 = vmatmul.bf16.gmra.mxu0 %v1669
    %v3142 = vpop.f32.mrf.mxu0
    %v3143 = vadd.f32 %v3130, %v3142
    %v3144 = vpop.f32.mrf.mxu0
    %3145 = vdwg.mxu0
    %3146 = vmatpush.bf16.msra.mxu0 %v2696
    %3147 = vmatpush.bf16.msra.mxu0 %v2689
    %3148 = vmatpush.bf16.msra.mxu0 %v2682
    %3149 = vmatpush.bf16.msra.mxu0 %v2675
    %3150 = vmatpush.bf16.msra.mxu0 %v2668
    %3151 = vmatpush.bf16.msra.mxu0 %v2661
    %3152 = vmatpush.bf16.msra.mxu0 %v2654
    %3153 = vmatpush.bf16.msra.mxu0 %v2647
    %3154 = vmatmul.bf16.gmra.mxu0 %v1666
    %v3155 = vpop.f32.mrf.mxu0
    %v3156 = vadd.f32 %v1929, %v3155
    %v3157 = vpop.f32.mrf.mxu0
    %3158 = vdwg.mxu0
    %3159 = vmatpush.bf16.msra.mxu0 %v2752
    %3160 = vmatpush.bf16.msra.mxu0 %v2745
    %3161 = vmatpush.bf16.msra.mxu0 %v2738
    %3162 = vmatpush.bf16.msra.mxu0 %v2731
    %3163 = vmatpush.bf16.msra.mxu0 %v2724
    %3164 = vmatpush.bf16.msra.mxu0 %v2717
    %3165 = vmatpush.bf16.msra.mxu0 %v2710
    %3166 = vmatpush.bf16.msra.mxu0 %v2703
    %3167 = vmatmul.bf16.gmra.mxu0 %v1667
    %v3168 = vpop.f32.mrf.mxu0
    %v3169 = vadd.f32 %v3156, %v3168
    %v3170 = vpop.f32.mrf.mxu0
    %3171 = vdwg.mxu0
    %3172 = vmatpush.bf16.msra.mxu0 %v2808
    %3173 = vmatpush.bf16.msra.mxu0 %v2801
    %3174 = vmatpush.bf16.msra.mxu0 %v2794
    %3175 = vmatpush.bf16.msra.mxu0 %v2787
    %3176 = vmatpush.bf16.msra.mxu0 %v2780
    %3177 = vmatpush.bf16.msra.mxu0 %v2773
    %3178 = vmatpush.bf16.msra.mxu0 %v2766
    %3179 = vmatpush.bf16.msra.mxu0 %v2759
    %3180 = vmatmul.bf16.gmra.mxu0 %v1668
    %v3181 = vpop.f32.mrf.mxu0
    %v3182 = vadd.f32 %v3169, %v3181
    %v3183 = vpop.f32.mrf.mxu0
    %3184 = vdwg.mxu0
    %3185 = vmatpush.bf16.msra.mxu0 %v2864
    %3186 = vmatpush.bf16.msra.mxu0 %v2857
    %3187 = vmatpush.bf16.msra.mxu0 %v2850
    %3188 = vmatpush.bf16.msra.mxu0 %v2843
    %3189 = vmatpush.bf16.msra.mxu0 %v2836
    %3190 = vmatpush.bf16.msra.mxu0 %v2829
    %3191 = vmatpush.bf16.msra.mxu0 %v2822
    %3192 = vmatpush.bf16.msra.mxu0 %v2815
    %3193 = vmatmul.bf16.gmra.mxu0 %v1669
    %v3194 = vpop.f32.mrf.mxu0
    %v3195 = vadd.f32 %v3182, %v3194
    %v3196 = vpop.f32.mrf.mxu0
    %3197 = vdwg.mxu0
    %3198 = vmatpush.bf16.msra.mxu0 %v2697
    %3199 = vmatpush.bf16.msra.mxu0 %v2690
    %3200 = vmatpush.bf16.msra.mxu0 %v2683
    %3201 = vmatpush.bf16.msra.mxu0 %v2676
    %3202 = vmatpush.bf16.msra.mxu0 %v2669
    %3203 = vmatpush.bf16.msra.mxu0 %v2662
    %3204 = vmatpush.bf16.msra.mxu0 %v2655
    %3205 = vmatpush.bf16.msra.mxu0 %v2648
    %3206 = vmatmul.bf16.gmra.mxu0 %v1666
    %v3207 = vpop.f32.mrf.mxu0
    %v3208 = vadd.f32 %v1930, %v3207
    %v3209 = vpop.f32.mrf.mxu0
    %3210 = vdwg.mxu0
    %3211 = vmatpush.bf16.msra.mxu0 %v2753
    %3212 = vmatpush.bf16.msra.mxu0 %v2746
    %3213 = vmatpush.bf16.msra.mxu0 %v2739
    %3214 = vmatpush.bf16.msra.mxu0 %v2732
    %3215 = vmatpush.bf16.msra.mxu0 %v2725
    %3216 = vmatpush.bf16.msra.mxu0 %v2718
    %3217 = vmatpush.bf16.msra.mxu0 %v2711
    %3218 = vmatpush.bf16.msra.mxu0 %v2704
    %3219 = vmatmul.bf16.gmra.mxu0 %v1667
    %v3220 = vpop.f32.mrf.mxu0
    %v3221 = vadd.f32 %v3208, %v3220
    %v3222 = vpop.f32.mrf.mxu0
    %3223 = vdwg.mxu0
    %3224 = vmatpush.bf16.msra.mxu0 %v2809
    %3225 = vmatpush.bf16.msra.mxu0 %v2802
    %3226 = vmatpush.bf16.msra.mxu0 %v2795
    %3227 = vmatpush.bf16.msra.mxu0 %v2788
    %3228 = vmatpush.bf16.msra.mxu0 %v2781
    %3229 = vmatpush.bf16.msra.mxu0 %v2774
    %3230 = vmatpush.bf16.msra.mxu0 %v2767
    %3231 = vmatpush.bf16.msra.mxu0 %v2760
    %3232 = vmatmul.bf16.gmra.mxu0 %v1668
    %v3233 = vpop.f32.mrf.mxu0
    %v3234 = vadd.f32 %v3221, %v3233
    %v3235 = vpop.f32.mrf.mxu0
    %3236 = vdwg.mxu0
    %3237 = vmatpush.bf16.msra.mxu0 %v2865
    %3238 = vmatpush.bf16.msra.mxu0 %v2858
    %3239 = vmatpush.bf16.msra.mxu0 %v2851
    %3240 = vmatpush.bf16.msra.mxu0 %v2844
    %3241 = vmatpush.bf16.msra.mxu0 %v2837
    %3242 = vmatpush.bf16.msra.mxu0 %v2830
    %3243 = vmatpush.bf16.msra.mxu0 %v2823
    %3244 = vmatpush.bf16.msra.mxu0 %v2816
    %3245 = vmatmul.bf16.gmra.mxu0 %v1669
    %v3246 = vpop.f32.mrf.mxu0
    %v3247 = vadd.f32 %v3234, %v3246
    %v3248 = vpop.f32.mrf.mxu0
    %3249 = vdwg.mxu0
    %3250 = vmatpush.bf16.msra.mxu0 %v2698
    %3251 = vmatpush.bf16.msra.mxu0 %v2691
    %3252 = vmatpush.bf16.msra.mxu0 %v2684
    %3253 = vmatpush.bf16.msra.mxu0 %v2677
    %3254 = vmatpush.bf16.msra.mxu0 %v2670
    %3255 = vmatpush.bf16.msra.mxu0 %v2663
    %3256 = vmatpush.bf16.msra.mxu0 %v2656
    %3257 = vmatpush.bf16.msra.mxu0 %v2649
    %3258 = vmatmul.bf16.gmra.mxu0 %v1666
    %v3259 = vpop.f32.mrf.mxu0
    %v3260 = vadd.f32 %v1931, %v3259
    %v3261 = vpop.f32.mrf.mxu0
    %3262 = vdwg.mxu0
    %3263 = vmatpush.bf16.msra.mxu0 %v2754
    %3264 = vmatpush.bf16.msra.mxu0 %v2747
    %3265 = vmatpush.bf16.msra.mxu0 %v2740
    %3266 = vmatpush.bf16.msra.mxu0 %v2733
    %3267 = vmatpush.bf16.msra.mxu0 %v2726
    %3268 = vmatpush.bf16.msra.mxu0 %v2719
    %3269 = vmatpush.bf16.msra.mxu0 %v2712
    %3270 = vmatpush.bf16.msra.mxu0 %v2705
    %3271 = vmatmul.bf16.gmra.mxu0 %v1667
    %v3272 = vpop.f32.mrf.mxu0
    %v3273 = vadd.f32 %v3260, %v3272
    %v3274 = vpop.f32.mrf.mxu0
    %3275 = vdwg.mxu0
    %3276 = vmatpush.bf16.msra.mxu0 %v2810
    %3277 = vmatpush.bf16.msra.mxu0 %v2803
    %3278 = vmatpush.bf16.msra.mxu0 %v2796
    %3279 = vmatpush.bf16.msra.mxu0 %v2789
    %3280 = vmatpush.bf16.msra.mxu0 %v2782
    %3281 = vmatpush.bf16.msra.mxu0 %v2775
    %3282 = vmatpush.bf16.msra.mxu0 %v2768
    %3283 = vmatpush.bf16.msra.mxu0 %v2761
    %3284 = vmatmul.bf16.gmra.mxu0 %v1668
    %v3285 = vpop.f32.mrf.mxu0
    %v3286 = vadd.f32 %v3273, %v3285
    %v3287 = vpop.f32.mrf.mxu0
    %3288 = vdwg.mxu0
    %3289 = vmatpush.bf16.msra.mxu0 %v2866
    %3290 = vmatpush.bf16.msra.mxu0 %v2859
    %3291 = vmatpush.bf16.msra.mxu0 %v2852
    %3292 = vmatpush.bf16.msra.mxu0 %v2845
    %3293 = vmatpush.bf16.msra.mxu0 %v2838
    %3294 = vmatpush.bf16.msra.mxu0 %v2831
    %3295 = vmatpush.bf16.msra.mxu0 %v2824
    %3296 = vmatpush.bf16.msra.mxu0 %v2817
    %3297 = vmatmul.bf16.gmra.mxu0 %v1669
    %v3298 = vpop.f32.mrf.mxu0
    %v3299 = vadd.f32 %v3286, %v3298
    %v3300 = vpop.f32.mrf.mxu0
    %3301 = vdwg.mxu0
    %3302 = vmatpush.bf16.msra.mxu0 %v2699
    %3303 = vmatpush.bf16.msra.mxu0 %v2692
    %3304 = vmatpush.bf16.msra.mxu0 %v2685
    %3305 = vmatpush.bf16.msra.mxu0 %v2678
    %3306 = vmatpush.bf16.msra.mxu0 %v2671
    %3307 = vmatpush.bf16.msra.mxu0 %v2664
    %3308 = vmatpush.bf16.msra.mxu0 %v2657
    %3309 = vmatpush.bf16.msra.mxu0 %v2650
    %3310 = vmatmul.bf16.gmra.mxu0 %v1666
    %v3311 = vpop.f32.mrf.mxu0
    %v3312 = vadd.f32 %v1932, %v3311
    %v3313 = vpop.f32.mrf.mxu0
    %3314 = vdwg.mxu0
    %3315 = vmatpush.bf16.msra.mxu0 %v2755
    %3316 = vmatpush.bf16.msra.mxu0 %v2748
    %3317 = vmatpush.bf16.msra.mxu0 %v2741
    %3318 = vmatpush.bf16.msra.mxu0 %v2734
    %3319 = vmatpush.bf16.msra.mxu0 %v2727
    %3320 = vmatpush.bf16.msra.mxu0 %v2720
    %3321 = vmatpush.bf16.msra.mxu0 %v2713
    %3322 = vmatpush.bf16.msra.mxu0 %v2706
    %3323 = vmatmul.bf16.gmra.mxu0 %v1667
    %v3324 = vpop.f32.mrf.mxu0
    %v3325 = vadd.f32 %v3312, %v3324
    %v3326 = vpop.f32.mrf.mxu0
    %3327 = vdwg.mxu0
    %3328 = vmatpush.bf16.msra.mxu0 %v2811
    %3329 = vmatpush.bf16.msra.mxu0 %v2804
    %3330 = vmatpush.bf16.msra.mxu0 %v2797
    %3331 = vmatpush.bf16.msra.mxu0 %v2790
    %3332 = vmatpush.bf16.msra.mxu0 %v2783
    %3333 = vmatpush.bf16.msra.mxu0 %v2776
    %3334 = vmatpush.bf16.msra.mxu0 %v2769
    %3335 = vmatpush.bf16.msra.mxu0 %v2762
    %3336 = vmatmul.bf16.gmra.mxu0 %v1668
    %v3337 = vpop.f32.mrf.mxu0
    %v3338 = vadd.f32 %v3325, %v3337
    %v3339 = vpop.f32.mrf.mxu0
    %3340 = vdwg.mxu0
    %3341 = vmatpush.bf16.msra.mxu0 %v2867
    %3342 = vmatpush.bf16.msra.mxu0 %v2860
    %3343 = vmatpush.bf16.msra.mxu0 %v2853
    %3344 = vmatpush.bf16.msra.mxu0 %v2846
    %3345 = vmatpush.bf16.msra.mxu0 %v2839
    %3346 = vmatpush.bf16.msra.mxu0 %v2832
    %3347 = vmatpush.bf16.msra.mxu0 %v2825
    %3348 = vmatpush.bf16.msra.mxu0 %v2818
    %3349 = vmatmul.bf16.gmra.mxu0 %v1669
    %v3350 = vpop.f32.mrf.mxu0
    %v3351 = vadd.f32 %v3338, %v3350
    %v3352 = vpop.f32.mrf.mxu0
    %3353 = vdwg.mxu0
    %3354 = vmatpush.bf16.msra.mxu0 %v2700
    %3355 = vmatpush.bf16.msra.mxu0 %v2693
    %3356 = vmatpush.bf16.msra.mxu0 %v2686
    %3357 = vmatpush.bf16.msra.mxu0 %v2679
    %3358 = vmatpush.bf16.msra.mxu0 %v2672
    %3359 = vmatpush.bf16.msra.mxu0 %v2665
    %3360 = vmatpush.bf16.msra.mxu0 %v2658
    %3361 = vmatpush.bf16.msra.mxu0 %v2651
    %3362 = vmatmul.bf16.gmra.mxu0 %v1666
    %v3363 = vpop.f32.mrf.mxu0
    %v3364 = vadd.f32 %v1933, %v3363
    %v3365 = vpop.f32.mrf.mxu0
    %3366 = vdwg.mxu0
    %3367 = vmatpush.bf16.msra.mxu0 %v2756
    %3368 = vmatpush.bf16.msra.mxu0 %v2749
    %3369 = vmatpush.bf16.msra.mxu0 %v2742
    %3370 = vmatpush.bf16.msra.mxu0 %v2735
    %3371 = vmatpush.bf16.msra.mxu0 %v2728
    %3372 = vmatpush.bf16.msra.mxu0 %v2721
    %3373 = vmatpush.bf16.msra.mxu0 %v2714
    %3374 = vmatpush.bf16.msra.mxu0 %v2707
    %3375 = vmatmul.bf16.gmra.mxu0 %v1667
    %v3376 = vpop.f32.mrf.mxu0
    %v3377 = vadd.f32 %v3364, %v3376
    %v3378 = vpop.f32.mrf.mxu0
    %3379 = vdwg.mxu0
    %3380 = vmatpush.bf16.msra.mxu0 %v2812
    %3381 = vmatpush.bf16.msra.mxu0 %v2805
    %3382 = vmatpush.bf16.msra.mxu0 %v2798
    %3383 = vmatpush.bf16.msra.mxu0 %v2791
    %3384 = vmatpush.bf16.msra.mxu0 %v2784
    %3385 = vmatpush.bf16.msra.mxu0 %v2777
    %3386 = vmatpush.bf16.msra.mxu0 %v2770
    %3387 = vmatpush.bf16.msra.mxu0 %v2763
    %3388 = vmatmul.bf16.gmra.mxu0 %v1668
    %v3389 = vpop.f32.mrf.mxu0
    %v3390 = vadd.f32 %v3377, %v3389
    %v3391 = vpop.f32.mrf.mxu0
    %3392 = vdwg.mxu0
    %3393 = vmatpush.bf16.msra.mxu0 %v2868
    %3394 = vmatpush.bf16.msra.mxu0 %v2861
    %3395 = vmatpush.bf16.msra.mxu0 %v2854
    %3396 = vmatpush.bf16.msra.mxu0 %v2847
    %3397 = vmatpush.bf16.msra.mxu0 %v2840
    %3398 = vmatpush.bf16.msra.mxu0 %v2833
    %3399 = vmatpush.bf16.msra.mxu0 %v2826
    %3400 = vmatpush.bf16.msra.mxu0 %v2819
    %3401 = vmatmul.bf16.gmra.mxu0 %v1669
    %v3402 = vpop.f32.mrf.mxu0
    %v3403 = vadd.f32 %v3390, %v3402
    %v3404 = vpop.f32.mrf.mxu0
    %3405 = vdwg.mxu0
    %3406 = vmatpush.bf16.msra.mxu0 %v2701
    %3407 = vmatpush.bf16.msra.mxu0 %v2694
    %3408 = vmatpush.bf16.msra.mxu0 %v2687
    %3409 = vmatpush.bf16.msra.mxu0 %v2680
    %3410 = vmatpush.bf16.msra.mxu0 %v2673
    %3411 = vmatpush.bf16.msra.mxu0 %v2666
    %3412 = vmatpush.bf16.msra.mxu0 %v2659
    %3413 = vmatpush.bf16.msra.mxu0 %v2652
    %3414 = vmatmul.bf16.gmra.mxu0 %v1666
    %v3415 = vpop.f32.mrf.mxu0
    %v3416 = vadd.f32 %v1934, %v3415
    %v3417 = vpop.f32.mrf.mxu0
    %3418 = vdwg.mxu0
    %3419 = vmatpush.bf16.msra.mxu0 %v2757
    %3420 = vmatpush.bf16.msra.mxu0 %v2750
    %3421 = vmatpush.bf16.msra.mxu0 %v2743
    %3422 = vmatpush.bf16.msra.mxu0 %v2736
    %3423 = vmatpush.bf16.msra.mxu0 %v2729
    %3424 = vmatpush.bf16.msra.mxu0 %v2722
    %3425 = vmatpush.bf16.msra.mxu0 %v2715
    %3426 = vmatpush.bf16.msra.mxu0 %v2708
    %3427 = vmatmul.bf16.gmra.mxu0 %v1667
    %v3428 = vpop.f32.mrf.mxu0
    %v3429 = vadd.f32 %v3416, %v3428
    %v3430 = vpop.f32.mrf.mxu0
    %3431 = vdwg.mxu0
    %3432 = vmatpush.bf16.msra.mxu0 %v2813
    %3433 = vmatpush.bf16.msra.mxu0 %v2806
    %3434 = vmatpush.bf16.msra.mxu0 %v2799
    %3435 = vmatpush.bf16.msra.mxu0 %v2792
    %3436 = vmatpush.bf16.msra.mxu0 %v2785
    %3437 = vmatpush.bf16.msra.mxu0 %v2778
    %3438 = vmatpush.bf16.msra.mxu0 %v2771
    %3439 = vmatpush.bf16.msra.mxu0 %v2764
    %3440 = vmatmul.bf16.gmra.mxu0 %v1668
    %v3441 = vpop.f32.mrf.mxu0
    %v3442 = vadd.f32 %v3429, %v3441
    %v3443 = vpop.f32.mrf.mxu0
    %3444 = vdwg.mxu0
    %3445 = vmatpush.bf16.msra.mxu0 %v2869
    %3446 = vmatpush.bf16.msra.mxu0 %v2862
    %3447 = vmatpush.bf16.msra.mxu0 %v2855
    %3448 = vmatpush.bf16.msra.mxu0 %v2848
    %3449 = vmatpush.bf16.msra.mxu0 %v2841
    %3450 = vmatpush.bf16.msra.mxu0 %v2834
    %3451 = vmatpush.bf16.msra.mxu0 %v2827
    %3452 = vmatpush.bf16.msra.mxu0 %v2820
    %3453 = vmatmul.bf16.gmra.mxu0 %v1669
    %v3454 = vpop.f32.mrf.mxu0
    %v3455 = vadd.f32 %v3442, %v3454
    %v3456 = vpop.f32.mrf.mxu0
    %3457 = vdwg.mxu0
    %v3458 = vsub.f32 0.0, %v3143
    %v3459 = vsub.f32 0.0, %v3195
    %v3460 = vsub.f32 0.0, %v3247
    %v3461 = vsub.f32 0.0, %v3299
    %v3462 = vsub.f32 0.0, %v3351
    %v3463 = vsub.f32 0.0, %v3403
    %v3464 = vsub.f32 0.0, %v3455
    %v3465 = vmul.f32 %v3458, 1.442695
    %v3466 = vpow.pop %v3465
    %v3467 = vmul.f32 %v3459, 1.442695
    %v3468 = vpow.pop %v3467
    %v3469 = vmul.f32 %v3460, 1.442695
    %v3470 = vpow.pop %v3469
    %v3471 = vmul.f32 %v3461, 1.442695
    %v3472 = vpow.pop %v3471
    %v3473 = vmul.f32 %v3462, 1.442695
    %v3474 = vpow.pop %v3473
    %v3475 = vmul.f32 %v3463, 1.442695
    %v3476 = vpow.pop %v3475
    %v3477 = vmul.f32 %v3464, 1.442695
    %v3478 = vpow.pop %v3477
    %v3479 = vadd.f32 %v3466, 1.0
    %v3480 = vadd.f32 %v3468, 1.0
    %v3481 = vadd.f32 %v3470, 1.0
    %v3482 = vadd.f32 %v3472, 1.0
    %v3483 = vadd.f32 %v3474, 1.0
    %v3484 = vadd.f32 %v3476, 1.0
    %v3485 = vadd.f32 %v3478, 1.0
    %v3486 = vrcp.pop %v3479
    %v3487 = vrcp.pop %v3480
    %v3488 = vrcp.pop %v3481
    %v3489 = vrcp.pop %v3482
    %v3490 = vrcp.pop %v3483
    %v3491 = vrcp.pop %v3484
    %v3492 = vrcp.pop %v3485
    %3493 = vst [vmem:[#allocation11] sm:$0xff] %v3486
    %3494 = vst [vmem:[#allocation11 + $0x8] sm:$0xff] %v3487
    %3495 = vst [vmem:[#allocation11 + $0x10] sm:$0xff] %v3488
    %3496 = vst [vmem:[#allocation11 + $0x18] sm:$0xff] %v3489
    %3497 = vst [vmem:[#allocation11 + $0x20] sm:$0xff] %v3490
    %3498 = vst [vmem:[#allocation11 + $0x28] sm:$0xff] %v3491
    %3499 = vst [vmem:[#allocation11 + $0x30] sm:$0xff] %v3492
    // Predicated region
    $region42: #{tpu_custom_call.1} parent=1 // pred_check
      _
    $region43: #{tpu_custom_call.1} parent=1 // pred_check_branch
      %3501 = sbr.rel (0) target = $region45
    $region44: #{tpu_custom_call.1} parent=1 // pred_region
      %3503 = vsyncadd [#allocation4], 0
      %s3505 = sshll.u32 [#allocation11], 4
      %s3506 = int_to_ptr.vmem [resolvable:$true] %s3505
      %s3507 = sshll.u32 %s5, 4
      %s3508 = int_to_ptr.hbm [resolvable:$true] %s3507
      %3510 = dma.vmem_to_hbm [thread:$0]  %s3506, 896, %s3508, [#allocation4]
    $region45: #{tpu_custom_call.1} parent=1 // pred_fallthru
      _
    // Predicated region
    $region46: #{tpu_custom_call.1} parent=1 // pred_check
      _
    $region47: #{tpu_custom_call.1} parent=1 // pred_check_branch
      %3512 = sbr.rel (0) target = $region49
    $region48: #{tpu_custom_call.1} parent=1 // pred_region
      %3514 = dma.done [#allocation4], 896
    $region49: #{tpu_custom_call.1} parent=1 // pred_fallthru
      _
    %3515 = vsyncpa [#allocation3], 1
    %3516 = vsyncpa [#allocation6], 1
    %3517 = vsyncpa [#allocation9], 1
    %3518 = vsyncpa [#allocation4], 1

</llo_original>
